<compile_context>
chip_gen: v7x
topology: tpu7x:2x2x1
jax: 0.10.0
libtpu: 0.0.40
codegen_flags: <defaults>
</compile_context>

<pallas_src>
import functools

import jax
import jax.numpy as jnp
from jax.experimental import pallas as pl
from jax.experimental.pallas import tpu as pltpu

BINS = 25
_OUT_LANES = 128   # lane-dense output slab; column 0 carries the AP values
_ACC_LANES = 128   # lane-dense accumulator width (>= bins, multiple of 128)
_PAD_SCORE = -1.0  # sentinel score: cumulative quantizer value 0 in bins < bins-1


def _round_up(x, m):
    return ((x + m - 1) // m) * m


def _ap_kernel(score_ref, label_ref, ap_ref, cc_ref, cs_ref, *,
               bins, euclidean, n_valid_total):
    """Accumulate per-bin cumulative sums over N tiles; finalize AP on the last."""
    n_idx = pl.program_id(1)
    n_last = pl.num_programs(1) - 1

    @pl.when(n_idx == 0)
    def _init():
        cc_ref[...] = jnp.zeros_like(cc_ref)
        cs_ref[...] = jnp.zeros_like(cs_ref)

    s = score_ref[...].astype(jnp.float32)   # (tb, tn)
    y = label_ref[...].astype(jnp.float32)   # (tb, tn)
    tb, tn = s.shape

    if euclidean:
        # score = 1 - sqrt(2.0001 - 2*score); NaN for score > 1.00005 (same as ref).
        s = 1.0 - jnp.sqrt(2.0001 - 2.0 * s)

    a = float(bins - 1)
    sa = s * a                                # hoisted: shared by every bin

    lane = jax.lax.broadcasted_iota(jnp.int32, (tb, _ACC_LANES), 1)
    cs_tile = jnp.zeros((tb, _ACC_LANES), jnp.float32)
    cc_tile = jnp.zeros((tb, _ACC_LANES), jnp.float32)

    # bins 0 .. bins-2 : cumulative quantizer value = clamp(sa + bias_k, 0, 1).
    # Padded columns carry score = _PAD_SCORE -> sa + bias_k <= 0 -> contribute 0.
    for k in range(bins - 1):
        bias = float(k - (bins - 2))
        t = jnp.minimum(jnp.maximum(sa + bias, 0.0), 1.0)        # (tb, tn)
        cs_col = jnp.sum(t, axis=1, keepdims=True)               # (tb, 1)
        cc_col = jnp.sum(t * y, axis=1, keepdims=True)           # (tb, 1)
        sel = lane == k
        cs_tile = jnp.where(sel, cs_col, cs_tile)                # lane-dense select
        cc_tile = jnp.where(sel, cc_col, cc_tile)

    # last bin: cumulative quantizer value is exactly 1 for every *valid* sample.
    valid = jnp.maximum(
        0, jnp.minimum(tn, n_valid_total - n_idx * tn)).astype(jnp.float32)
    sel_last = lane == (bins - 1)
    cs_tile = jnp.where(sel_last, valid, cs_tile)
    cc_tile = jnp.where(sel_last, jnp.sum(y, axis=1, keepdims=True), cc_tile)

    cs_ref[...] += cs_tile        # single unmasked (tb, 128) accumulate
    cc_ref[...] += cc_tile

    @pl.when(n_idx == n_last)
    def _finalize():
        cc = cc_ref[...]          # cumulative correct; lanes >= bins stay exactly 0
        cs = cs_ref[...]          # cumulative samples
        prec = cc / (cs + 1e-16)                                  # cum_precision
        cc_prev = jnp.concatenate(
            [jnp.zeros((tb, 1), jnp.float32), cc[:, : _ACC_LANES - 1]], axis=1)
        per_bin = cc - cc_prev                                    # correct_per_bin
        # lane == bins: per_bin = -total but prec = 0 -> no spurious contribution.
        total = jnp.sum(jnp.where(lane == (bins - 1), cc, 0.0),
                        axis=1, keepdims=True)
        # Rows without any positive give total == 0 -> NaN (matches reference).
        ap = jnp.sum(per_bin * prec, axis=1, keepdims=True) / total
        ap_ref[...] = jnp.broadcast_to(ap, ap_ref.shape)


def _vmem_capacity_bytes():
    try:
        return int(pltpu.get_tpu_info().vmem_capacity_bytes)
    except Exception:
        return 64 << 20   # v7x-safe fallback


def differentiable_ap(score, label, *, bins=BINS, euclidean=True, tb=None, tn=None):
    """Pallas TPU implementation of DifferentiableAP.forward -> (B,) float32."""
    B, N = score.shape
    assert label.shape == (B, N), (score.shape, label.shape)
    assert 2 <= bins <= _ACC_LANES

    # Sublane alignment for (possibly sub-32-bit) input dtypes: f32->8, bf16->16, i8->32.
    tb_align = 8
    for dt in (score.dtype, label.dtype):
        tb_align = max(tb_align, 32 // max(1, jnp.dtype(dt).itemsize))
    if tb is None:
        tb = _round_up(min(32, _round_up(B, tb_align)), tb_align)
    else:
        tb = _round_up(int(tb), tb_align)

    vmem_cap = _vmem_capacity_bytes()
    # ~10 live f32 copies of one input tile (2 inputs x 2 pipeline buffers +
    # elementwise temporaries) -> keep tiles around vmem/160 elements.
    tile_elems_cap = max(64 * 1024, min(1024 * 1024, vmem_cap // 160))

    if tn is None:
        cap_n = max(128, ((tile_elems_cap // tb) // 128) * 128)
        n_steps = max(1, -(-N // cap_n))
        tn = min(cap_n, _round_up(-(-N // n_steps), 128))   # balanced lane-heavy tiles
    else:
        tn = _round_up(int(tn), 128)
        n_steps = max(1, -(-N // tn))
    Np = n_steps * tn
    Bp = _round_up(B, tb)

    if (Bp, Np) != (B, N):
        score = jnp.pad(score, ((0, Bp - B), (0, Np - N)),
                        constant_values=_PAD_SCORE)
        label = jnp.pad(label, ((0, Bp - B), (0, Np - N)))

    kernel = functools.partial(_ap_kernel, bins=bins, euclidean=euclidean,
                               n_valid_total=N)

    in_bytes = (jnp.dtype(score.dtype).itemsize
                + jnp.dtype(label.dtype).itemsize) * tb * tn
    est = 2 * in_bytes                      # double-buffered input blocks
    est += 6 * tb * tn * 4                  # f32 elementwise temporaries
    est += 8 * tb * _OUT_LANES * 4          # accumulators + output block
    vmem_limit = int(min(3 * vmem_cap // 4, max(32 << 20, 2 * est)))

    out = pl.pallas_call(
        kernel,
        out_shape=jax.ShapeDtypeStruct((Bp, _OUT_LANES), jnp.float32),
        grid_spec=pltpu.PrefetchScalarGridSpec(
            num_scalar_prefetch=0,
            grid=(Bp // tb, Np // tn),          # reduction (N) axis last
            in_specs=[
                pl.BlockSpec((tb, tn), lambda b, n: (b, n)),
                pl.BlockSpec((tb, tn), lambda b, n: (b, n)),
            ],
            out_specs=pl.BlockSpec((tb, _OUT_LANES), lambda b, n: (b, 0)),
            scratch_shapes=[
                pltpu.VMEM((tb, _ACC_LANES), jnp.float32),   # cum_correct
                pltpu.VMEM((tb, _ACC_LANES), jnp.float32),   # cum_samples
            ],
        ),
        compiler_params=pltpu.CompilerParams(
            dimension_semantics=("parallel", "arbitrary"),
            vmem_limit_bytes=vmem_limit,
        ),
    )(score, label)                # no wrapper-side casts; kernel upcasts in VMEM
    return out[:B, 0]


def _ap_reference(score, label, *, bins=BINS, euclidean=True):
    """Plain-JAX reference mirroring the PyTorch module (for the sanity check)."""
    s = score.astype(jnp.float32)
    if euclidean:
        s = 1.0 - jnp.sqrt(2.0001 - 2.0 * s)
    nq = bins
    a = float(nq - 1)
    idx = jnp.arange(nq, dtype=jnp.float32)[None, :, None]
    centers = 1.0 - idx / a
    x = s[:, None, :]
    left = jnp.where(idx == 0.0, 1.0, 1.0 - (x - centers) * a)
    right = jnp.where(idx == a, 1.0, 1.0 + (x - centers) * a)
    q = jnp.maximum(jnp.minimum(left, right), 0.0)
    samples = q.sum(axis=2)
    correct = (q * label[:, None, :].astype(jnp.float32)).sum(axis=2)
    cum_correct = jnp.cumsum(correct, axis=1)
    cum_prec = cum_correct / (1e-16 + jnp.cumsum(samples, axis=1))
    return (correct * cum_prec).sum(axis=1) / cum_correct[:, -1]


if __name__ == "__main__":
    key = jax.random.PRNGKey(0)
    k1, k2, k3, k4 = jax.random.split(key, 4)

    # cosine-similarity-like scores in (-1, 1); binary match labels.
    # N deliberately not a multiple of 128 to exercise the padded/masked tail.
    B, N = 16, 200
    score = jax.random.uniform(k1, (B, N), jnp.float32, minval=-1.0, maxval=1.0)
    label = (jax.random.uniform(k2, (B, N)) < 0.2).astype(jnp.float32)
    label = label.at[:, 0].set(1.0)          # at least one positive per row

    ap = jax.block_until_ready(differentiable_ap(score, label))
    ref = _ap_reference(score, label)
    assert ap.shape == (B,)
    assert jnp.allclose(ap, ref, atol=2e-3, rtol=2e-3), (ap, ref)

    # euclidean=False path
    ap_e = jax.block_until_ready(differentiable_ap(score, label, euclidean=False))
    ref_e = _ap_reference(score, label, euclidean=False)
    assert jnp.allclose(ap_e, ref_e, atol=2e-3, rtol=2e-3), (ap_e, ref_e)

    # second config: odd batch (padded rows), forced small tn -> 3 N-tiles with a
    # ragged last tile -> exercises the cross-tile accumulator + valid-count path.
    B2, N2 = 12, 300
    score2 = jax.random.uniform(k3, (B2, N2), jnp.float32, minval=-1.0, maxval=1.0)
    label2 = (jax.random.uniform(k4, (B2, N2)) < 0.2).astype(jnp.float32)
    label2 = label2.at[:, 0].set(1.0)
    ap2 = jax.block_until_ready(differentiable_ap(score2, label2, tb=8, tn=128))
    ref2 = _ap_reference(score2, label2)
    assert jnp.allclose(ap2, ref2, atol=2e-3, rtol=2e-3), (ap2, ref2)

    print("KERNEL_OK")
</pallas_src>

<mosaic_0001>
module attributes {stable_mosaic.version = 11 : i64} {
  func.func @_ap_kernel(%arg0: i32, %arg1: i32, %arg2: memref<16x256xf32, #tpu.memory_space<vmem>>, %arg3: memref<16x256xf32, #tpu.memory_space<vmem>>, %arg4: memref<16x128xf32, #tpu.memory_space<vmem>>, %arg5: memref<16x128xf32, #tpu.memory_space<vmem>>, %arg6: memref<16x128xf32, #tpu.memory_space<vmem>>) attributes {dimension_semantics = [#tpu.dimension_semantics<parallel>, #tpu.dimension_semantics<arbitrary>], iteration_bounds = array<i64: 1, 1>, scalar_prefetch = 0 : i64, scratch_operands = 2 : i64, tpu.core_type = #tpu.core_type<tc>, window_params = [{transform_indices = @transform_0, window_bounds = array<i64: 16, 256>}, {transform_indices = @transform_1, window_bounds = array<i64: 16, 256>}, {transform_indices = @transform_2, window_bounds = array<i64: 16, 128>}]} {
    %c0_i32 = arith.constant 0 : i32
    %0 = arith.cmpi eq, %arg1, %c0_i32 : i32
    %1 = arith.extui %0 : i1 to i32
    %c0_i32_0 = arith.constant 0 : i32
    %2 = arith.cmpi ne, %1, %c0_i32_0 : i32
    scf.if %2 {
      %cst_143 = arith.constant 0.000000e+00 : f32
      %496 = vector.broadcast %cst_143 : f32 to vector<16x128xf32>
      %c0_144 = arith.constant 0 : index
      %c0_145 = arith.constant 0 : index
      %497 = vector.load %arg5[%c0_144, %c0_145] : memref<16x128xf32, #tpu.memory_space<vmem>>, vector<16x128xf32>
      tpu.vector_store %arg5[%c0_144, %c0_145], %496 {strides = array<i32>} : memref<16x128xf32, #tpu.memory_space<vmem>>, vector<16x128xf32>,
      %cst_146 = arith.constant 0.000000e+00 : f32
      %498 = vector.broadcast %cst_146 : f32 to vector<16x128xf32>
      %c0_147 = arith.constant 0 : index
      %c0_148 = arith.constant 0 : index
      %499 = vector.load %arg6[%c0_147, %c0_148] : memref<16x128xf32, #tpu.memory_space<vmem>>, vector<16x128xf32>
      tpu.vector_store %arg6[%c0_147, %c0_148], %498 {strides = array<i32>} : memref<16x128xf32, #tpu.memory_space<vmem>>, vector<16x128xf32>,
    } else {
    }
    %c0 = arith.constant 0 : index
    %c0_1 = arith.constant 0 : index
    %3 = vector.load %arg2[%c0, %c0_1] : memref<16x256xf32, #tpu.memory_space<vmem>>, vector<16x256xf32>
    %c0_2 = arith.constant 0 : index
    %c0_3 = arith.constant 0 : index
    %4 = vector.load %arg3[%c0_2, %c0_3] : memref<16x256xf32, #tpu.memory_space<vmem>>, vector<16x256xf32>
    %cst = arith.constant 2.000000e+00 : f32
    %5 = vector.broadcast %cst : f32 to vector<16x256xf32>
    %6 = arith.mulf %5, %3 : vector<16x256xf32>
    %cst_4 = arith.constant 2.000100e+00 : f32
    %7 = vector.broadcast %cst_4 : f32 to vector<16x256xf32>
    %8 = arith.subf %7, %6 : vector<16x256xf32>
    %9 = math.sqrt %8 : vector<16x256xf32>
    %cst_5 = arith.constant 1.000000e+00 : f32
    %10 = vector.broadcast %cst_5 : f32 to vector<16x256xf32>
    %11 = arith.subf %10, %9 : vector<16x256xf32>
    %cst_6 = arith.constant 2.400000e+01 : f32
    %12 = vector.broadcast %cst_6 : f32 to vector<16x256xf32>
    %13 = arith.mulf %11, %12 : vector<16x256xf32>
    %14 = tpu.iota {dimensions = array<i32: 1>} : vector<16x128xi32>
    %cst_7 = arith.constant 0.000000e+00 : f32
    %15 = vector.broadcast %cst_7 : f32 to vector<16x128xf32>
    %cst_8 = arith.constant 0.000000e+00 : f32
    %16 = vector.broadcast %cst_8 : f32 to vector<16x128xf32>
    %cst_9 = arith.constant -2.300000e+01 : f32
    %17 = vector.broadcast %cst_9 : f32 to vector<16x256xf32>
    %18 = arith.addf %13, %17 : vector<16x256xf32>
    %cst_10 = arith.constant 0.000000e+00 : f32
    %19 = vector.broadcast %cst_10 : f32 to vector<16x256xf32>
    %20 = arith.maximumf %18, %19 : vector<16x256xf32>
    %cst_11 = arith.constant 1.000000e+00 : f32
    %21 = vector.broadcast %cst_11 : f32 to vector<16x256xf32>
    %22 = arith.minimumf %20, %21 : vector<16x256xf32>
    %cst_12 = arith.constant dense<0.000000e+00> : vector<16xf32>
    %23 = vector.multi_reduction <add>, %22, %cst_12 [1] : vector<16x256xf32> to vector<16xf32>
    %24 = vector.shape_cast %23 : vector<16xf32> to vector<16x1xf32>
    %25 = arith.mulf %22, %4 : vector<16x256xf32>
    %cst_13 = arith.constant dense<0.000000e+00> : vector<16xf32>
    %26 = vector.multi_reduction <add>, %25, %cst_13 [1] : vector<16x256xf32> to vector<16xf32>
    %27 = vector.shape_cast %26 : vector<16xf32> to vector<16x1xf32>
    %c0_i32_14 = arith.constant 0 : i32
    %28 = vector.broadcast %c0_i32_14 : i32 to vector<16x128xi32>
    %29 = arith.cmpi eq, %14, %28 : vector<16x128xi32>
    %30 = vector.shape_cast %24 : vector<16x1xf32> to vector<16x1xf32>
    %31 = vector.broadcast %30 : vector<16x1xf32> to vector<16x128xf32>
    %32 = arith.select %29, %31, %15 : vector<16x128xi1>, vector<16x128xf32>
    %33 = vector.shape_cast %27 : vector<16x1xf32> to vector<16x1xf32>
    %34 = vector.broadcast %33 : vector<16x1xf32> to vector<16x128xf32>
    %35 = arith.select %29, %34, %16 : vector<16x128xi1>, vector<16x128xf32>
    %cst_15 = arith.constant -2.200000e+01 : f32
    %36 = vector.broadcast %cst_15 : f32 to vector<16x256xf32>
    %37 = arith.addf %13, %36 : vector<16x256xf32>
    %cst_16 = arith.constant 0.000000e+00 : f32
    %38 = vector.broadcast %cst_16 : f32 to vector<16x256xf32>
    %39 = arith.maximumf %37, %38 : vector<16x256xf32>
    %cst_17 = arith.constant 1.000000e+00 : f32
    %40 = vector.broadcast %cst_17 : f32 to vector<16x256xf32>
    %41 = arith.minimumf %39, %40 : vector<16x256xf32>
    %cst_18 = arith.constant dense<0.000000e+00> : vector<16xf32>
    %42 = vector.multi_reduction <add>, %41, %cst_18 [1] : vector<16x256xf32> to vector<16xf32>
    %43 = vector.shape_cast %42 : vector<16xf32> to vector<16x1xf32>
    %44 = arith.mulf %41, %4 : vector<16x256xf32>
    %cst_19 = arith.constant dense<0.000000e+00> : vector<16xf32>
    %45 = vector.multi_reduction <add>, %44, %cst_19 [1] : vector<16x256xf32> to vector<16xf32>
    %46 = vector.shape_cast %45 : vector<16xf32> to vector<16x1xf32>
    %c1_i32 = arith.constant 1 : i32
    %47 = vector.broadcast %c1_i32 : i32 to vector<16x128xi32>
    %48 = arith.cmpi eq, %14, %47 : vector<16x128xi32>
    %49 = vector.shape_cast %43 : vector<16x1xf32> to vector<16x1xf32>
    %50 = vector.broadcast %49 : vector<16x1xf32> to vector<16x128xf32>
    %51 = arith.select %48, %50, %32 : vector<16x128xi1>, vector<16x128xf32>
    %52 = vector.shape_cast %46 : vector<16x1xf32> to vector<16x1xf32>
    %53 = vector.broadcast %52 : vector<16x1xf32> to vector<16x128xf32>
    %54 = arith.select %48, %53, %35 : vector<16x128xi1>, vector<16x128xf32>
    %cst_20 = arith.constant -2.100000e+01 : f32
    %55 = vector.broadcast %cst_20 : f32 to vector<16x256xf32>
    %56 = arith.addf %13, %55 : vector<16x256xf32>
    %cst_21 = arith.constant 0.000000e+00 : f32
    %57 = vector.broadcast %cst_21 : f32 to vector<16x256xf32>
    %58 = arith.maximumf %56, %57 : vector<16x256xf32>
    %cst_22 = arith.constant 1.000000e+00 : f32
    %59 = vector.broadcast %cst_22 : f32 to vector<16x256xf32>
    %60 = arith.minimumf %58, %59 : vector<16x256xf32>
    %cst_23 = arith.constant dense<0.000000e+00> : vector<16xf32>
    %61 = vector.multi_reduction <add>, %60, %cst_23 [1] : vector<16x256xf32> to vector<16xf32>
    %62 = vector.shape_cast %61 : vector<16xf32> to vector<16x1xf32>
    %63 = arith.mulf %60, %4 : vector<16x256xf32>
    %cst_24 = arith.constant dense<0.000000e+00> : vector<16xf32>
    %64 = vector.multi_reduction <add>, %63, %cst_24 [1] : vector<16x256xf32> to vector<16xf32>
    %65 = vector.shape_cast %64 : vector<16xf32> to vector<16x1xf32>
    %c2_i32 = arith.constant 2 : i32
    %66 = vector.broadcast %c2_i32 : i32 to vector<16x128xi32>
    %67 = arith.cmpi eq, %14, %66 : vector<16x128xi32>
    %68 = vector.shape_cast %62 : vector<16x1xf32> to vector<16x1xf32>
    %69 = vector.broadcast %68 : vector<16x1xf32> to vector<16x128xf32>
    %70 = arith.select %67, %69, %51 : vector<16x128xi1>, vector<16x128xf32>
    %71 = vector.shape_cast %65 : vector<16x1xf32> to vector<16x1xf32>
    %72 = vector.broadcast %71 : vector<16x1xf32> to vector<16x128xf32>
    %73 = arith.select %67, %72, %54 : vector<16x128xi1>, vector<16x128xf32>
    %cst_25 = arith.constant -2.000000e+01 : f32
    %74 = vector.broadcast %cst_25 : f32 to vector<16x256xf32>
    %75 = arith.addf %13, %74 : vector<16x256xf32>
    %cst_26 = arith.constant 0.000000e+00 : f32
    %76 = vector.broadcast %cst_26 : f32 to vector<16x256xf32>
    %77 = arith.maximumf %75, %76 : vector<16x256xf32>
    %cst_27 = arith.constant 1.000000e+00 : f32
    %78 = vector.broadcast %cst_27 : f32 to vector<16x256xf32>
    %79 = arith.minimumf %77, %78 : vector<16x256xf32>
    %cst_28 = arith.constant dense<0.000000e+00> : vector<16xf32>
    %80 = vector.multi_reduction <add>, %79, %cst_28 [1] : vector<16x256xf32> to vector<16xf32>
    %81 = vector.shape_cast %80 : vector<16xf32> to vector<16x1xf32>
    %82 = arith.mulf %79, %4 : vector<16x256xf32>
    %cst_29 = arith.constant dense<0.000000e+00> : vector<16xf32>
    %83 = vector.multi_reduction <add>, %82, %cst_29 [1] : vector<16x256xf32> to vector<16xf32>
    %84 = vector.shape_cast %83 : vector<16xf32> to vector<16x1xf32>
    %c3_i32 = arith.constant 3 : i32
    %85 = vector.broadcast %c3_i32 : i32 to vector<16x128xi32>
    %86 = arith.cmpi eq, %14, %85 : vector<16x128xi32>
    %87 = vector.shape_cast %81 : vector<16x1xf32> to vector<16x1xf32>
    %88 = vector.broadcast %87 : vector<16x1xf32> to vector<16x128xf32>
    %89 = arith.select %86, %88, %70 : vector<16x128xi1>, vector<16x128xf32>
    %90 = vector.shape_cast %84 : vector<16x1xf32> to vector<16x1xf32>
    %91 = vector.broadcast %90 : vector<16x1xf32> to vector<16x128xf32>
    %92 = arith.select %86, %91, %73 : vector<16x128xi1>, vector<16x128xf32>
    %cst_30 = arith.constant -1.900000e+01 : f32
    %93 = vector.broadcast %cst_30 : f32 to vector<16x256xf32>
    %94 = arith.addf %13, %93 : vector<16x256xf32>
    %cst_31 = arith.constant 0.000000e+00 : f32
    %95 = vector.broadcast %cst_31 : f32 to vector<16x256xf32>
    %96 = arith.maximumf %94, %95 : vector<16x256xf32>
    %cst_32 = arith.constant 1.000000e+00 : f32
    %97 = vector.broadcast %cst_32 : f32 to vector<16x256xf32>
    %98 = arith.minimumf %96, %97 : vector<16x256xf32>
    %cst_33 = arith.constant dense<0.000000e+00> : vector<16xf32>
    %99 = vector.multi_reduction <add>, %98, %cst_33 [1] : vector<16x256xf32> to vector<16xf32>
    %100 = vector.shape_cast %99 : vector<16xf32> to vector<16x1xf32>
    %101 = arith.mulf %98, %4 : vector<16x256xf32>
    %cst_34 = arith.constant dense<0.000000e+00> : vector<16xf32>
    %102 = vector.multi_reduction <add>, %101, %cst_34 [1] : vector<16x256xf32> to vector<16xf32>
    %103 = vector.shape_cast %102 : vector<16xf32> to vector<16x1xf32>
    %c4_i32 = arith.constant 4 : i32
    %104 = vector.broadcast %c4_i32 : i32 to vector<16x128xi32>
    %105 = arith.cmpi eq, %14, %104 : vector<16x128xi32>
    %106 = vector.shape_cast %100 : vector<16x1xf32> to vector<16x1xf32>
    %107 = vector.broadcast %106 : vector<16x1xf32> to vector<16x128xf32>
    %108 = arith.select %105, %107, %89 : vector<16x128xi1>, vector<16x128xf32>
    %109 = vector.shape_cast %103 : vector<16x1xf32> to vector<16x1xf32>
    %110 = vector.broadcast %109 : vector<16x1xf32> to vector<16x128xf32>
    %111 = arith.select %105, %110, %92 : vector<16x128xi1>, vector<16x128xf32>
    %cst_35 = arith.constant -1.800000e+01 : f32
    %112 = vector.broadcast %cst_35 : f32 to vector<16x256xf32>
    %113 = arith.addf %13, %112 : vector<16x256xf32>
    %cst_36 = arith.constant 0.000000e+00 : f32
    %114 = vector.broadcast %cst_36 : f32 to vector<16x256xf32>
    %115 = arith.maximumf %113, %114 : vector<16x256xf32>
    %cst_37 = arith.constant 1.000000e+00 : f32
    %116 = vector.broadcast %cst_37 : f32 to vector<16x256xf32>
    %117 = arith.minimumf %115, %116 : vector<16x256xf32>
    %cst_38 = arith.constant dense<0.000000e+00> : vector<16xf32>
    %118 = vector.multi_reduction <add>, %117, %cst_38 [1] : vector<16x256xf32> to vector<16xf32>
    %119 = vector.shape_cast %118 : vector<16xf32> to vector<16x1xf32>
    %120 = arith.mulf %117, %4 : vector<16x256xf32>
    %cst_39 = arith.constant dense<0.000000e+00> : vector<16xf32>
    %121 = vector.multi_reduction <add>, %120, %cst_39 [1] : vector<16x256xf32> to vector<16xf32>
    %122 = vector.shape_cast %121 : vector<16xf32> to vector<16x1xf32>
    %c5_i32 = arith.constant 5 : i32
    %123 = vector.broadcast %c5_i32 : i32 to vector<16x128xi32>
    %124 = arith.cmpi eq, %14, %123 : vector<16x128xi32>
    %125 = vector.shape_cast %119 : vector<16x1xf32> to vector<16x1xf32>
    %126 = vector.broadcast %125 : vector<16x1xf32> to vector<16x128xf32>
    %127 = arith.select %124, %126, %108 : vector<16x128xi1>, vector<16x128xf32>
    %128 = vector.shape_cast %122 : vector<16x1xf32> to vector<16x1xf32>
    %129 = vector.broadcast %128 : vector<16x1xf32> to vector<16x128xf32>
    %130 = arith.select %124, %129, %111 : vector<16x128xi1>, vector<16x128xf32>
    %cst_40 = arith.constant -1.700000e+01 : f32
    %131 = vector.broadcast %cst_40 : f32 to vector<16x256xf32>
    %132 = arith.addf %13, %131 : vector<16x256xf32>
    %cst_41 = arith.constant 0.000000e+00 : f32
    %133 = vector.broadcast %cst_41 : f32 to vector<16x256xf32>
    %134 = arith.maximumf %132, %133 : vector<16x256xf32>
    %cst_42 = arith.constant 1.000000e+00 : f32
    %135 = vector.broadcast %cst_42 : f32 to vector<16x256xf32>
    %136 = arith.minimumf %134, %135 : vector<16x256xf32>
    %cst_43 = arith.constant dense<0.000000e+00> : vector<16xf32>
    %137 = vector.multi_reduction <add>, %136, %cst_43 [1] : vector<16x256xf32> to vector<16xf32>
    %138 = vector.shape_cast %137 : vector<16xf32> to vector<16x1xf32>
    %139 = arith.mulf %136, %4 : vector<16x256xf32>
    %cst_44 = arith.constant dense<0.000000e+00> : vector<16xf32>
    %140 = vector.multi_reduction <add>, %139, %cst_44 [1] : vector<16x256xf32> to vector<16xf32>
    %141 = vector.shape_cast %140 : vector<16xf32> to vector<16x1xf32>
    %c6_i32 = arith.constant 6 : i32
    %142 = vector.broadcast %c6_i32 : i32 to vector<16x128xi32>
    %143 = arith.cmpi eq, %14, %142 : vector<16x128xi32>
    %144 = vector.shape_cast %138 : vector<16x1xf32> to vector<16x1xf32>
    %145 = vector.broadcast %144 : vector<16x1xf32> to vector<16x128xf32>
    %146 = arith.select %143, %145, %127 : vector<16x128xi1>, vector<16x128xf32>
    %147 = vector.shape_cast %141 : vector<16x1xf32> to vector<16x1xf32>
    %148 = vector.broadcast %147 : vector<16x1xf32> to vector<16x128xf32>
    %149 = arith.select %143, %148, %130 : vector<16x128xi1>, vector<16x128xf32>
    %cst_45 = arith.constant -1.600000e+01 : f32
    %150 = vector.broadcast %cst_45 : f32 to vector<16x256xf32>
    %151 = arith.addf %13, %150 : vector<16x256xf32>
    %cst_46 = arith.constant 0.000000e+00 : f32
    %152 = vector.broadcast %cst_46 : f32 to vector<16x256xf32>
    %153 = arith.maximumf %151, %152 : vector<16x256xf32>
    %cst_47 = arith.constant 1.000000e+00 : f32
    %154 = vector.broadcast %cst_47 : f32 to vector<16x256xf32>
    %155 = arith.minimumf %153, %154 : vector<16x256xf32>
    %cst_48 = arith.constant dense<0.000000e+00> : vector<16xf32>
    %156 = vector.multi_reduction <add>, %155, %cst_48 [1] : vector<16x256xf32> to vector<16xf32>
    %157 = vector.shape_cast %156 : vector<16xf32> to vector<16x1xf32>
    %158 = arith.mulf %155, %4 : vector<16x256xf32>
    %cst_49 = arith.constant dense<0.000000e+00> : vector<16xf32>
    %159 = vector.multi_reduction <add>, %158, %cst_49 [1] : vector<16x256xf32> to vector<16xf32>
    %160 = vector.shape_cast %159 : vector<16xf32> to vector<16x1xf32>
    %c7_i32 = arith.constant 7 : i32
    %161 = vector.broadcast %c7_i32 : i32 to vector<16x128xi32>
    %162 = arith.cmpi eq, %14, %161 : vector<16x128xi32>
    %163 = vector.shape_cast %157 : vector<16x1xf32> to vector<16x1xf32>
    %164 = vector.broadcast %163 : vector<16x1xf32> to vector<16x128xf32>
    %165 = arith.select %162, %164, %146 : vector<16x128xi1>, vector<16x128xf32>
    %166 = vector.shape_cast %160 : vector<16x1xf32> to vector<16x1xf32>
    %167 = vector.broadcast %166 : vector<16x1xf32> to vector<16x128xf32>
    %168 = arith.select %162, %167, %149 : vector<16x128xi1>, vector<16x128xf32>
    %cst_50 = arith.constant -1.500000e+01 : f32
    %169 = vector.broadcast %cst_50 : f32 to vector<16x256xf32>
    %170 = arith.addf %13, %169 : vector<16x256xf32>
    %cst_51 = arith.constant 0.000000e+00 : f32
    %171 = vector.broadcast %cst_51 : f32 to vector<16x256xf32>
    %172 = arith.maximumf %170, %171 : vector<16x256xf32>
    %cst_52 = arith.constant 1.000000e+00 : f32
    %173 = vector.broadcast %cst_52 : f32 to vector<16x256xf32>
    %174 = arith.minimumf %172, %173 : vector<16x256xf32>
    %cst_53 = arith.constant dense<0.000000e+00> : vector<16xf32>
    %175 = vector.multi_reduction <add>, %174, %cst_53 [1] : vector<16x256xf32> to vector<16xf32>
    %176 = vector.shape_cast %175 : vector<16xf32> to vector<16x1xf32>
    %177 = arith.mulf %174, %4 : vector<16x256xf32>
    %cst_54 = arith.constant dense<0.000000e+00> : vector<16xf32>
    %178 = vector.multi_reduction <add>, %177, %cst_54 [1] : vector<16x256xf32> to vector<16xf32>
    %179 = vector.shape_cast %178 : vector<16xf32> to vector<16x1xf32>
    %c8_i32 = arith.constant 8 : i32
    %180 = vector.broadcast %c8_i32 : i32 to vector<16x128xi32>
    %181 = arith.cmpi eq, %14, %180 : vector<16x128xi32>
    %182 = vector.shape_cast %176 : vector<16x1xf32> to vector<16x1xf32>
    %183 = vector.broadcast %182 : vector<16x1xf32> to vector<16x128xf32>
    %184 = arith.select %181, %183, %165 : vector<16x128xi1>, vector<16x128xf32>
    %185 = vector.shape_cast %179 : vector<16x1xf32> to vector<16x1xf32>
    %186 = vector.broadcast %185 : vector<16x1xf32> to vector<16x128xf32>
    %187 = arith.select %181, %186, %168 : vector<16x128xi1>, vector<16x128xf32>
    %cst_55 = arith.constant -1.400000e+01 : f32
    %188 = vector.broadcast %cst_55 : f32 to vector<16x256xf32>
    %189 = arith.addf %13, %188 : vector<16x256xf32>
    %cst_56 = arith.constant 0.000000e+00 : f32
    %190 = vector.broadcast %cst_56 : f32 to vector<16x256xf32>
    %191 = arith.maximumf %189, %190 : vector<16x256xf32>
    %cst_57 = arith.constant 1.000000e+00 : f32
    %192 = vector.broadcast %cst_57 : f32 to vector<16x256xf32>
    %193 = arith.minimumf %191, %192 : vector<16x256xf32>
    %cst_58 = arith.constant dense<0.000000e+00> : vector<16xf32>
    %194 = vector.multi_reduction <add>, %193, %cst_58 [1] : vector<16x256xf32> to vector<16xf32>
    %195 = vector.shape_cast %194 : vector<16xf32> to vector<16x1xf32>
    %196 = arith.mulf %193, %4 : vector<16x256xf32>
    %cst_59 = arith.constant dense<0.000000e+00> : vector<16xf32>
    %197 = vector.multi_reduction <add>, %196, %cst_59 [1] : vector<16x256xf32> to vector<16xf32>
    %198 = vector.shape_cast %197 : vector<16xf32> to vector<16x1xf32>
    %c9_i32 = arith.constant 9 : i32
    %199 = vector.broadcast %c9_i32 : i32 to vector<16x128xi32>
    %200 = arith.cmpi eq, %14, %199 : vector<16x128xi32>
    %201 = vector.shape_cast %195 : vector<16x1xf32> to vector<16x1xf32>
    %202 = vector.broadcast %201 : vector<16x1xf32> to vector<16x128xf32>
    %203 = arith.select %200, %202, %184 : vector<16x128xi1>, vector<16x128xf32>
    %204 = vector.shape_cast %198 : vector<16x1xf32> to vector<16x1xf32>
    %205 = vector.broadcast %204 : vector<16x1xf32> to vector<16x128xf32>
    %206 = arith.select %200, %205, %187 : vector<16x128xi1>, vector<16x128xf32>
    %cst_60 = arith.constant -1.300000e+01 : f32
    %207 = vector.broadcast %cst_60 : f32 to vector<16x256xf32>
    %208 = arith.addf %13, %207 : vector<16x256xf32>
    %cst_61 = arith.constant 0.000000e+00 : f32
    %209 = vector.broadcast %cst_61 : f32 to vector<16x256xf32>
    %210 = arith.maximumf %208, %209 : vector<16x256xf32>
    %cst_62 = arith.constant 1.000000e+00 : f32
    %211 = vector.broadcast %cst_62 : f32 to vector<16x256xf32>
    %212 = arith.minimumf %210, %211 : vector<16x256xf32>
    %cst_63 = arith.constant dense<0.000000e+00> : vector<16xf32>
    %213 = vector.multi_reduction <add>, %212, %cst_63 [1] : vector<16x256xf32> to vector<16xf32>
    %214 = vector.shape_cast %213 : vector<16xf32> to vector<16x1xf32>
    %215 = arith.mulf %212, %4 : vector<16x256xf32>
    %cst_64 = arith.constant dense<0.000000e+00> : vector<16xf32>
    %216 = vector.multi_reduction <add>, %215, %cst_64 [1] : vector<16x256xf32> to vector<16xf32>
    %217 = vector.shape_cast %216 : vector<16xf32> to vector<16x1xf32>
    %c10_i32 = arith.constant 10 : i32
    %218 = vector.broadcast %c10_i32 : i32 to vector<16x128xi32>
    %219 = arith.cmpi eq, %14, %218 : vector<16x128xi32>
    %220 = vector.shape_cast %214 : vector<16x1xf32> to vector<16x1xf32>
    %221 = vector.broadcast %220 : vector<16x1xf32> to vector<16x128xf32>
    %222 = arith.select %219, %221, %203 : vector<16x128xi1>, vector<16x128xf32>
    %223 = vector.shape_cast %217 : vector<16x1xf32> to vector<16x1xf32>
    %224 = vector.broadcast %223 : vector<16x1xf32> to vector<16x128xf32>
    %225 = arith.select %219, %224, %206 : vector<16x128xi1>, vector<16x128xf32>
    %cst_65 = arith.constant -1.200000e+01 : f32
    %226 = vector.broadcast %cst_65 : f32 to vector<16x256xf32>
    %227 = arith.addf %13, %226 : vector<16x256xf32>
    %cst_66 = arith.constant 0.000000e+00 : f32
    %228 = vector.broadcast %cst_66 : f32 to vector<16x256xf32>
    %229 = arith.maximumf %227, %228 : vector<16x256xf32>
    %cst_67 = arith.constant 1.000000e+00 : f32
    %230 = vector.broadcast %cst_67 : f32 to vector<16x256xf32>
    %231 = arith.minimumf %229, %230 : vector<16x256xf32>
    %cst_68 = arith.constant dense<0.000000e+00> : vector<16xf32>
    %232 = vector.multi_reduction <add>, %231, %cst_68 [1] : vector<16x256xf32> to vector<16xf32>
    %233 = vector.shape_cast %232 : vector<16xf32> to vector<16x1xf32>
    %234 = arith.mulf %231, %4 : vector<16x256xf32>
    %cst_69 = arith.constant dense<0.000000e+00> : vector<16xf32>
    %235 = vector.multi_reduction <add>, %234, %cst_69 [1] : vector<16x256xf32> to vector<16xf32>
    %236 = vector.shape_cast %235 : vector<16xf32> to vector<16x1xf32>
    %c11_i32 = arith.constant 11 : i32
    %237 = vector.broadcast %c11_i32 : i32 to vector<16x128xi32>
    %238 = arith.cmpi eq, %14, %237 : vector<16x128xi32>
    %239 = vector.shape_cast %233 : vector<16x1xf32> to vector<16x1xf32>
    %240 = vector.broadcast %239 : vector<16x1xf32> to vector<16x128xf32>
    %241 = arith.select %238, %240, %222 : vector<16x128xi1>, vector<16x128xf32>
    %242 = vector.shape_cast %236 : vector<16x1xf32> to vector<16x1xf32>
    %243 = vector.broadcast %242 : vector<16x1xf32> to vector<16x128xf32>
    %244 = arith.select %238, %243, %225 : vector<16x128xi1>, vector<16x128xf32>
    %cst_70 = arith.constant -1.100000e+01 : f32
    %245 = vector.broadcast %cst_70 : f32 to vector<16x256xf32>
    %246 = arith.addf %13, %245 : vector<16x256xf32>
    %cst_71 = arith.constant 0.000000e+00 : f32
    %247 = vector.broadcast %cst_71 : f32 to vector<16x256xf32>
    %248 = arith.maximumf %246, %247 : vector<16x256xf32>
    %cst_72 = arith.constant 1.000000e+00 : f32
    %249 = vector.broadcast %cst_72 : f32 to vector<16x256xf32>
    %250 = arith.minimumf %248, %249 : vector<16x256xf32>
    %cst_73 = arith.constant dense<0.000000e+00> : vector<16xf32>
    %251 = vector.multi_reduction <add>, %250, %cst_73 [1] : vector<16x256xf32> to vector<16xf32>
    %252 = vector.shape_cast %251 : vector<16xf32> to vector<16x1xf32>
    %253 = arith.mulf %250, %4 : vector<16x256xf32>
    %cst_74 = arith.constant dense<0.000000e+00> : vector<16xf32>
    %254 = vector.multi_reduction <add>, %253, %cst_74 [1] : vector<16x256xf32> to vector<16xf32>
    %255 = vector.shape_cast %254 : vector<16xf32> to vector<16x1xf32>
    %c12_i32 = arith.constant 12 : i32
    %256 = vector.broadcast %c12_i32 : i32 to vector<16x128xi32>
    %257 = arith.cmpi eq, %14, %256 : vector<16x128xi32>
    %258 = vector.shape_cast %252 : vector<16x1xf32> to vector<16x1xf32>
    %259 = vector.broadcast %258 : vector<16x1xf32> to vector<16x128xf32>
    %260 = arith.select %257, %259, %241 : vector<16x128xi1>, vector<16x128xf32>
    %261 = vector.shape_cast %255 : vector<16x1xf32> to vector<16x1xf32>
    %262 = vector.broadcast %261 : vector<16x1xf32> to vector<16x128xf32>
    %263 = arith.select %257, %262, %244 : vector<16x128xi1>, vector<16x128xf32>
    %cst_75 = arith.constant -1.000000e+01 : f32
    %264 = vector.broadcast %cst_75 : f32 to vector<16x256xf32>
    %265 = arith.addf %13, %264 : vector<16x256xf32>
    %cst_76 = arith.constant 0.000000e+00 : f32
    %266 = vector.broadcast %cst_76 : f32 to vector<16x256xf32>
    %267 = arith.maximumf %265, %266 : vector<16x256xf32>
    %cst_77 = arith.constant 1.000000e+00 : f32
    %268 = vector.broadcast %cst_77 : f32 to vector<16x256xf32>
    %269 = arith.minimumf %267, %268 : vector<16x256xf32>
    %cst_78 = arith.constant dense<0.000000e+00> : vector<16xf32>
    %270 = vector.multi_reduction <add>, %269, %cst_78 [1] : vector<16x256xf32> to vector<16xf32>
    %271 = vector.shape_cast %270 : vector<16xf32> to vector<16x1xf32>
    %272 = arith.mulf %269, %4 : vector<16x256xf32>
    %cst_79 = arith.constant dense<0.000000e+00> : vector<16xf32>
    %273 = vector.multi_reduction <add>, %272, %cst_79 [1] : vector<16x256xf32> to vector<16xf32>
    %274 = vector.shape_cast %273 : vector<16xf32> to vector<16x1xf32>
    %c13_i32 = arith.constant 13 : i32
    %275 = vector.broadcast %c13_i32 : i32 to vector<16x128xi32>
    %276 = arith.cmpi eq, %14, %275 : vector<16x128xi32>
    %277 = vector.shape_cast %271 : vector<16x1xf32> to vector<16x1xf32>
    %278 = vector.broadcast %277 : vector<16x1xf32> to vector<16x128xf32>
    %279 = arith.select %276, %278, %260 : vector<16x128xi1>, vector<16x128xf32>
    %280 = vector.shape_cast %274 : vector<16x1xf32> to vector<16x1xf32>
    %281 = vector.broadcast %280 : vector<16x1xf32> to vector<16x128xf32>
    %282 = arith.select %276, %281, %263 : vector<16x128xi1>, vector<16x128xf32>
    %cst_80 = arith.constant -9.000000e+00 : f32
    %283 = vector.broadcast %cst_80 : f32 to vector<16x256xf32>
    %284 = arith.addf %13, %283 : vector<16x256xf32>
    %cst_81 = arith.constant 0.000000e+00 : f32
    %285 = vector.broadcast %cst_81 : f32 to vector<16x256xf32>
    %286 = arith.maximumf %284, %285 : vector<16x256xf32>
    %cst_82 = arith.constant 1.000000e+00 : f32
    %287 = vector.broadcast %cst_82 : f32 to vector<16x256xf32>
    %288 = arith.minimumf %286, %287 : vector<16x256xf32>
    %cst_83 = arith.constant dense<0.000000e+00> : vector<16xf32>
    %289 = vector.multi_reduction <add>, %288, %cst_83 [1] : vector<16x256xf32> to vector<16xf32>
    %290 = vector.shape_cast %289 : vector<16xf32> to vector<16x1xf32>
    %291 = arith.mulf %288, %4 : vector<16x256xf32>
    %cst_84 = arith.constant dense<0.000000e+00> : vector<16xf32>
    %292 = vector.multi_reduction <add>, %291, %cst_84 [1] : vector<16x256xf32> to vector<16xf32>
    %293 = vector.shape_cast %292 : vector<16xf32> to vector<16x1xf32>
    %c14_i32 = arith.constant 14 : i32
    %294 = vector.broadcast %c14_i32 : i32 to vector<16x128xi32>
    %295 = arith.cmpi eq, %14, %294 : vector<16x128xi32>
    %296 = vector.shape_cast %290 : vector<16x1xf32> to vector<16x1xf32>
    %297 = vector.broadcast %296 : vector<16x1xf32> to vector<16x128xf32>
    %298 = arith.select %295, %297, %279 : vector<16x128xi1>, vector<16x128xf32>
    %299 = vector.shape_cast %293 : vector<16x1xf32> to vector<16x1xf32>
    %300 = vector.broadcast %299 : vector<16x1xf32> to vector<16x128xf32>
    %301 = arith.select %295, %300, %282 : vector<16x128xi1>, vector<16x128xf32>
    %cst_85 = arith.constant -8.000000e+00 : f32
    %302 = vector.broadcast %cst_85 : f32 to vector<16x256xf32>
    %303 = arith.addf %13, %302 : vector<16x256xf32>
    %cst_86 = arith.constant 0.000000e+00 : f32
    %304 = vector.broadcast %cst_86 : f32 to vector<16x256xf32>
    %305 = arith.maximumf %303, %304 : vector<16x256xf32>
    %cst_87 = arith.constant 1.000000e+00 : f32
    %306 = vector.broadcast %cst_87 : f32 to vector<16x256xf32>
    %307 = arith.minimumf %305, %306 : vector<16x256xf32>
    %cst_88 = arith.constant dense<0.000000e+00> : vector<16xf32>
    %308 = vector.multi_reduction <add>, %307, %cst_88 [1] : vector<16x256xf32> to vector<16xf32>
    %309 = vector.shape_cast %308 : vector<16xf32> to vector<16x1xf32>
    %310 = arith.mulf %307, %4 : vector<16x256xf32>
    %cst_89 = arith.constant dense<0.000000e+00> : vector<16xf32>
    %311 = vector.multi_reduction <add>, %310, %cst_89 [1] : vector<16x256xf32> to vector<16xf32>
    %312 = vector.shape_cast %311 : vector<16xf32> to vector<16x1xf32>
    %c15_i32 = arith.constant 15 : i32
    %313 = vector.broadcast %c15_i32 : i32 to vector<16x128xi32>
    %314 = arith.cmpi eq, %14, %313 : vector<16x128xi32>
    %315 = vector.shape_cast %309 : vector<16x1xf32> to vector<16x1xf32>
    %316 = vector.broadcast %315 : vector<16x1xf32> to vector<16x128xf32>
    %317 = arith.select %314, %316, %298 : vector<16x128xi1>, vector<16x128xf32>
    %318 = vector.shape_cast %312 : vector<16x1xf32> to vector<16x1xf32>
    %319 = vector.broadcast %318 : vector<16x1xf32> to vector<16x128xf32>
    %320 = arith.select %314, %319, %301 : vector<16x128xi1>, vector<16x128xf32>
    %cst_90 = arith.constant -7.000000e+00 : f32
    %321 = vector.broadcast %cst_90 : f32 to vector<16x256xf32>
    %322 = arith.addf %13, %321 : vector<16x256xf32>
    %cst_91 = arith.constant 0.000000e+00 : f32
    %323 = vector.broadcast %cst_91 : f32 to vector<16x256xf32>
    %324 = arith.maximumf %322, %323 : vector<16x256xf32>
    %cst_92 = arith.constant 1.000000e+00 : f32
    %325 = vector.broadcast %cst_92 : f32 to vector<16x256xf32>
    %326 = arith.minimumf %324, %325 : vector<16x256xf32>
    %cst_93 = arith.constant dense<0.000000e+00> : vector<16xf32>
    %327 = vector.multi_reduction <add>, %326, %cst_93 [1] : vector<16x256xf32> to vector<16xf32>
    %328 = vector.shape_cast %327 : vector<16xf32> to vector<16x1xf32>
    %329 = arith.mulf %326, %4 : vector<16x256xf32>
    %cst_94 = arith.constant dense<0.000000e+00> : vector<16xf32>
    %330 = vector.multi_reduction <add>, %329, %cst_94 [1] : vector<16x256xf32> to vector<16xf32>
    %331 = vector.shape_cast %330 : vector<16xf32> to vector<16x1xf32>
    %c16_i32 = arith.constant 16 : i32
    %332 = vector.broadcast %c16_i32 : i32 to vector<16x128xi32>
    %333 = arith.cmpi eq, %14, %332 : vector<16x128xi32>
    %334 = vector.shape_cast %328 : vector<16x1xf32> to vector<16x1xf32>
    %335 = vector.broadcast %334 : vector<16x1xf32> to vector<16x128xf32>
    %336 = arith.select %333, %335, %317 : vector<16x128xi1>, vector<16x128xf32>
    %337 = vector.shape_cast %331 : vector<16x1xf32> to vector<16x1xf32>
    %338 = vector.broadcast %337 : vector<16x1xf32> to vector<16x128xf32>
    %339 = arith.select %333, %338, %320 : vector<16x128xi1>, vector<16x128xf32>
    %cst_95 = arith.constant -6.000000e+00 : f32
    %340 = vector.broadcast %cst_95 : f32 to vector<16x256xf32>
    %341 = arith.addf %13, %340 : vector<16x256xf32>
    %cst_96 = arith.constant 0.000000e+00 : f32
    %342 = vector.broadcast %cst_96 : f32 to vector<16x256xf32>
    %343 = arith.maximumf %341, %342 : vector<16x256xf32>
    %cst_97 = arith.constant 1.000000e+00 : f32
    %344 = vector.broadcast %cst_97 : f32 to vector<16x256xf32>
    %345 = arith.minimumf %343, %344 : vector<16x256xf32>
    %cst_98 = arith.constant dense<0.000000e+00> : vector<16xf32>
    %346 = vector.multi_reduction <add>, %345, %cst_98 [1] : vector<16x256xf32> to vector<16xf32>
    %347 = vector.shape_cast %346 : vector<16xf32> to vector<16x1xf32>
    %348 = arith.mulf %345, %4 : vector<16x256xf32>
    %cst_99 = arith.constant dense<0.000000e+00> : vector<16xf32>
    %349 = vector.multi_reduction <add>, %348, %cst_99 [1] : vector<16x256xf32> to vector<16xf32>
    %350 = vector.shape_cast %349 : vector<16xf32> to vector<16x1xf32>
    %c17_i32 = arith.constant 17 : i32
    %351 = vector.broadcast %c17_i32 : i32 to vector<16x128xi32>
    %352 = arith.cmpi eq, %14, %351 : vector<16x128xi32>
    %353 = vector.shape_cast %347 : vector<16x1xf32> to vector<16x1xf32>
    %354 = vector.broadcast %353 : vector<16x1xf32> to vector<16x128xf32>
    %355 = arith.select %352, %354, %336 : vector<16x128xi1>, vector<16x128xf32>
    %356 = vector.shape_cast %350 : vector<16x1xf32> to vector<16x1xf32>
    %357 = vector.broadcast %356 : vector<16x1xf32> to vector<16x128xf32>
    %358 = arith.select %352, %357, %339 : vector<16x128xi1>, vector<16x128xf32>
    %cst_100 = arith.constant -5.000000e+00 : f32
    %359 = vector.broadcast %cst_100 : f32 to vector<16x256xf32>
    %360 = arith.addf %13, %359 : vector<16x256xf32>
    %cst_101 = arith.constant 0.000000e+00 : f32
    %361 = vector.broadcast %cst_101 : f32 to vector<16x256xf32>
    %362 = arith.maximumf %360, %361 : vector<16x256xf32>
    %cst_102 = arith.constant 1.000000e+00 : f32
    %363 = vector.broadcast %cst_102 : f32 to vector<16x256xf32>
    %364 = arith.minimumf %362, %363 : vector<16x256xf32>
    %cst_103 = arith.constant dense<0.000000e+00> : vector<16xf32>
    %365 = vector.multi_reduction <add>, %364, %cst_103 [1] : vector<16x256xf32> to vector<16xf32>
    %366 = vector.shape_cast %365 : vector<16xf32> to vector<16x1xf32>
    %367 = arith.mulf %364, %4 : vector<16x256xf32>
    %cst_104 = arith.constant dense<0.000000e+00> : vector<16xf32>
    %368 = vector.multi_reduction <add>, %367, %cst_104 [1] : vector<16x256xf32> to vector<16xf32>
    %369 = vector.shape_cast %368 : vector<16xf32> to vector<16x1xf32>
    %c18_i32 = arith.constant 18 : i32
    %370 = vector.broadcast %c18_i32 : i32 to vector<16x128xi32>
    %371 = arith.cmpi eq, %14, %370 : vector<16x128xi32>
    %372 = vector.shape_cast %366 : vector<16x1xf32> to vector<16x1xf32>
    %373 = vector.broadcast %372 : vector<16x1xf32> to vector<16x128xf32>
    %374 = arith.select %371, %373, %355 : vector<16x128xi1>, vector<16x128xf32>
    %375 = vector.shape_cast %369 : vector<16x1xf32> to vector<16x1xf32>
    %376 = vector.broadcast %375 : vector<16x1xf32> to vector<16x128xf32>
    %377 = arith.select %371, %376, %358 : vector<16x128xi1>, vector<16x128xf32>
    %cst_105 = arith.constant -4.000000e+00 : f32
    %378 = vector.broadcast %cst_105 : f32 to vector<16x256xf32>
    %379 = arith.addf %13, %378 : vector<16x256xf32>
    %cst_106 = arith.constant 0.000000e+00 : f32
    %380 = vector.broadcast %cst_106 : f32 to vector<16x256xf32>
    %381 = arith.maximumf %379, %380 : vector<16x256xf32>
    %cst_107 = arith.constant 1.000000e+00 : f32
    %382 = vector.broadcast %cst_107 : f32 to vector<16x256xf32>
    %383 = arith.minimumf %381, %382 : vector<16x256xf32>
    %cst_108 = arith.constant dense<0.000000e+00> : vector<16xf32>
    %384 = vector.multi_reduction <add>, %383, %cst_108 [1] : vector<16x256xf32> to vector<16xf32>
    %385 = vector.shape_cast %384 : vector<16xf32> to vector<16x1xf32>
    %386 = arith.mulf %383, %4 : vector<16x256xf32>
    %cst_109 = arith.constant dense<0.000000e+00> : vector<16xf32>
    %387 = vector.multi_reduction <add>, %386, %cst_109 [1] : vector<16x256xf32> to vector<16xf32>
    %388 = vector.shape_cast %387 : vector<16xf32> to vector<16x1xf32>
    %c19_i32 = arith.constant 19 : i32
    %389 = vector.broadcast %c19_i32 : i32 to vector<16x128xi32>
    %390 = arith.cmpi eq, %14, %389 : vector<16x128xi32>
    %391 = vector.shape_cast %385 : vector<16x1xf32> to vector<16x1xf32>
    %392 = vector.broadcast %391 : vector<16x1xf32> to vector<16x128xf32>
    %393 = arith.select %390, %392, %374 : vector<16x128xi1>, vector<16x128xf32>
    %394 = vector.shape_cast %388 : vector<16x1xf32> to vector<16x1xf32>
    %395 = vector.broadcast %394 : vector<16x1xf32> to vector<16x128xf32>
    %396 = arith.select %390, %395, %377 : vector<16x128xi1>, vector<16x128xf32>
    %cst_110 = arith.constant -3.000000e+00 : f32
    %397 = vector.broadcast %cst_110 : f32 to vector<16x256xf32>
    %398 = arith.addf %13, %397 : vector<16x256xf32>
    %cst_111 = arith.constant 0.000000e+00 : f32
    %399 = vector.broadcast %cst_111 : f32 to vector<16x256xf32>
    %400 = arith.maximumf %398, %399 : vector<16x256xf32>
    %cst_112 = arith.constant 1.000000e+00 : f32
    %401 = vector.broadcast %cst_112 : f32 to vector<16x256xf32>
    %402 = arith.minimumf %400, %401 : vector<16x256xf32>
    %cst_113 = arith.constant dense<0.000000e+00> : vector<16xf32>
    %403 = vector.multi_reduction <add>, %402, %cst_113 [1] : vector<16x256xf32> to vector<16xf32>
    %404 = vector.shape_cast %403 : vector<16xf32> to vector<16x1xf32>
    %405 = arith.mulf %402, %4 : vector<16x256xf32>
    %cst_114 = arith.constant dense<0.000000e+00> : vector<16xf32>
    %406 = vector.multi_reduction <add>, %405, %cst_114 [1] : vector<16x256xf32> to vector<16xf32>
    %407 = vector.shape_cast %406 : vector<16xf32> to vector<16x1xf32>
    %c20_i32 = arith.constant 20 : i32
    %408 = vector.broadcast %c20_i32 : i32 to vector<16x128xi32>
    %409 = arith.cmpi eq, %14, %408 : vector<16x128xi32>
    %410 = vector.shape_cast %404 : vector<16x1xf32> to vector<16x1xf32>
    %411 = vector.broadcast %410 : vector<16x1xf32> to vector<16x128xf32>
    %412 = arith.select %409, %411, %393 : vector<16x128xi1>, vector<16x128xf32>
    %413 = vector.shape_cast %407 : vector<16x1xf32> to vector<16x1xf32>
    %414 = vector.broadcast %413 : vector<16x1xf32> to vector<16x128xf32>
    %415 = arith.select %409, %414, %396 : vector<16x128xi1>, vector<16x128xf32>
    %cst_115 = arith.constant -2.000000e+00 : f32
    %416 = vector.broadcast %cst_115 : f32 to vector<16x256xf32>
    %417 = arith.addf %13, %416 : vector<16x256xf32>
    %cst_116 = arith.constant 0.000000e+00 : f32
    %418 = vector.broadcast %cst_116 : f32 to vector<16x256xf32>
    %419 = arith.maximumf %417, %418 : vector<16x256xf32>
    %cst_117 = arith.constant 1.000000e+00 : f32
    %420 = vector.broadcast %cst_117 : f32 to vector<16x256xf32>
    %421 = arith.minimumf %419, %420 : vector<16x256xf32>
    %cst_118 = arith.constant dense<0.000000e+00> : vector<16xf32>
    %422 = vector.multi_reduction <add>, %421, %cst_118 [1] : vector<16x256xf32> to vector<16xf32>
    %423 = vector.shape_cast %422 : vector<16xf32> to vector<16x1xf32>
    %424 = arith.mulf %421, %4 : vector<16x256xf32>
    %cst_119 = arith.constant dense<0.000000e+00> : vector<16xf32>
    %425 = vector.multi_reduction <add>, %424, %cst_119 [1] : vector<16x256xf32> to vector<16xf32>
    %426 = vector.shape_cast %425 : vector<16xf32> to vector<16x1xf32>
    %c21_i32 = arith.constant 21 : i32
    %427 = vector.broadcast %c21_i32 : i32 to vector<16x128xi32>
    %428 = arith.cmpi eq, %14, %427 : vector<16x128xi32>
    %429 = vector.shape_cast %423 : vector<16x1xf32> to vector<16x1xf32>
    %430 = vector.broadcast %429 : vector<16x1xf32> to vector<16x128xf32>
    %431 = arith.select %428, %430, %412 : vector<16x128xi1>, vector<16x128xf32>
    %432 = vector.shape_cast %426 : vector<16x1xf32> to vector<16x1xf32>
    %433 = vector.broadcast %432 : vector<16x1xf32> to vector<16x128xf32>
    %434 = arith.select %428, %433, %415 : vector<16x128xi1>, vector<16x128xf32>
    %cst_120 = arith.constant -1.000000e+00 : f32
    %435 = vector.broadcast %cst_120 : f32 to vector<16x256xf32>
    %436 = arith.addf %13, %435 : vector<16x256xf32>
    %cst_121 = arith.constant 0.000000e+00 : f32
    %437 = vector.broadcast %cst_121 : f32 to vector<16x256xf32>
    %438 = arith.maximumf %436, %437 : vector<16x256xf32>
    %cst_122 = arith.constant 1.000000e+00 : f32
    %439 = vector.broadcast %cst_122 : f32 to vector<16x256xf32>
    %440 = arith.minimumf %438, %439 : vector<16x256xf32>
    %cst_123 = arith.constant dense<0.000000e+00> : vector<16xf32>
    %441 = vector.multi_reduction <add>, %440, %cst_123 [1] : vector<16x256xf32> to vector<16xf32>
    %442 = vector.shape_cast %441 : vector<16xf32> to vector<16x1xf32>
    %443 = arith.mulf %440, %4 : vector<16x256xf32>
    %cst_124 = arith.constant dense<0.000000e+00> : vector<16xf32>
    %444 = vector.multi_reduction <add>, %443, %cst_124 [1] : vector<16x256xf32> to vector<16xf32>
    %445 = vector.shape_cast %444 : vector<16xf32> to vector<16x1xf32>
    %c22_i32 = arith.constant 22 : i32
    %446 = vector.broadcast %c22_i32 : i32 to vector<16x128xi32>
    %447 = arith.cmpi eq, %14, %446 : vector<16x128xi32>
    %448 = vector.shape_cast %442 : vector<16x1xf32> to vector<16x1xf32>
    %449 = vector.broadcast %448 : vector<16x1xf32> to vector<16x128xf32>
    %450 = arith.select %447, %449, %431 : vector<16x128xi1>, vector<16x128xf32>
    %451 = vector.shape_cast %445 : vector<16x1xf32> to vector<16x1xf32>
    %452 = vector.broadcast %451 : vector<16x1xf32> to vector<16x128xf32>
    %453 = arith.select %447, %452, %434 : vector<16x128xi1>, vector<16x128xf32>
    %cst_125 = arith.constant 0.000000e+00 : f32
    %454 = vector.broadcast %cst_125 : f32 to vector<16x256xf32>
    %455 = arith.addf %13, %454 : vector<16x256xf32>
    %cst_126 = arith.constant 0.000000e+00 : f32
    %456 = vector.broadcast %cst_126 : f32 to vector<16x256xf32>
    %457 = arith.maximumf %455, %456 : vector<16x256xf32>
    %cst_127 = arith.constant 1.000000e+00 : f32
    %458 = vector.broadcast %cst_127 : f32 to vector<16x256xf32>
    %459 = arith.minimumf %457, %458 : vector<16x256xf32>
    %cst_128 = arith.constant dense<0.000000e+00> : vector<16xf32>
    %460 = vector.multi_reduction <add>, %459, %cst_128 [1] : vector<16x256xf32> to vector<16xf32>
    %461 = vector.shape_cast %460 : vector<16xf32> to vector<16x1xf32>
    %462 = arith.mulf %459, %4 : vector<16x256xf32>
    %cst_129 = arith.constant dense<0.000000e+00> : vector<16xf32>
    %463 = vector.multi_reduction <add>, %462, %cst_129 [1] : vector<16x256xf32> to vector<16xf32>
    %464 = vector.shape_cast %463 : vector<16xf32> to vector<16x1xf32>
    %c23_i32 = arith.constant 23 : i32
    %465 = vector.broadcast %c23_i32 : i32 to vector<16x128xi32>
    %466 = arith.cmpi eq, %14, %465 : vector<16x128xi32>
    %467 = vector.shape_cast %461 : vector<16x1xf32> to vector<16x1xf32>
    %468 = vector.broadcast %467 : vector<16x1xf32> to vector<16x128xf32>
    %469 = arith.select %466, %468, %450 : vector<16x128xi1>, vector<16x128xf32>
    %470 = vector.shape_cast %464 : vector<16x1xf32> to vector<16x1xf32>
    %471 = vector.broadcast %470 : vector<16x1xf32> to vector<16x128xf32>
    %472 = arith.select %466, %471, %453 : vector<16x128xi1>, vector<16x128xf32>
    %c256_i32 = arith.constant 256 : i32
    %473 = arith.muli %arg1, %c256_i32 : i32
    %c200_i32 = arith.constant 200 : i32
    %474 = arith.subi %c200_i32, %473 : i32
    %c256_i32_130 = arith.constant 256 : i32
    %475 = arith.minsi %c256_i32_130, %474 : i32
    %c0_i32_131 = arith.constant 0 : i32
    %476 = arith.maxsi %c0_i32_131, %475 : i32
    %477 = arith.sitofp %476 : i32 to f32
    %c24_i32 = arith.constant 24 : i32
    %478 = vector.broadcast %c24_i32 : i32 to vector<16x128xi32>
    %479 = arith.cmpi eq, %14, %478 : vector<16x128xi32>
    %480 = vector.broadcast %477 : f32 to vector<16x128xf32>
    %481 = arith.select %479, %480, %469 : vector<16x128xi1>, vector<16x128xf32>
    %cst_132 = arith.constant dense<0.000000e+00> : vector<16xf32>
    %482 = vector.multi_reduction <add>, %4, %cst_132 [1] : vector<16x256xf32> to vector<16xf32>
    %483 = vector.shape_cast %482 : vector<16xf32> to vector<16x1xf32>
    %484 = vector.shape_cast %483 : vector<16x1xf32> to vector<16x1xf32>
    %485 = vector.broadcast %484 : vector<16x1xf32> to vector<16x128xf32>
    %486 = arith.select %479, %485, %472 : vector<16x128xi1>, vector<16x128xf32>
    %c0_133 = arith.constant 0 : index
    %c0_134 = arith.constant 0 : index
    %487 = vector.load %arg6[%c0_133, %c0_134] : memref<16x128xf32, #tpu.memory_space<vmem>>, vector<16x128xf32>
    %488 = arith.addf %487, %481 : vector<16x128xf32>
    %c0_135 = arith.constant 0 : index
    %c0_136 = arith.constant 0 : index
    %489 = vector.load %arg6[%c0_135, %c0_136] : memref<16x128xf32, #tpu.memory_space<vmem>>, vector<16x128xf32>
    tpu.vector_store %arg6[%c0_135, %c0_136], %488 {strides = array<i32>} : memref<16x128xf32, #tpu.memory_space<vmem>>, vector<16x128xf32>,
    %c0_137 = arith.constant 0 : index
    %c0_138 = arith.constant 0 : index
    %490 = vector.load %arg5[%c0_137, %c0_138] : memref<16x128xf32, #tpu.memory_space<vmem>>, vector<16x128xf32>
    %491 = arith.addf %490, %486 : vector<16x128xf32>
    %c0_139 = arith.constant 0 : index
    %c0_140 = arith.constant 0 : index
    %492 = vector.load %arg5[%c0_139, %c0_140] : memref<16x128xf32, #tpu.memory_space<vmem>>, vector<16x128xf32>
    tpu.vector_store %arg5[%c0_139, %c0_140], %491 {strides = array<i32>} : memref<16x128xf32, #tpu.memory_space<vmem>>, vector<16x128xf32>,
    %c0_i32_141 = arith.constant 0 : i32
    %493 = arith.cmpi eq, %arg1, %c0_i32_141 : i32
    %494 = arith.extui %493 : i1 to i32
    %c0_i32_142 = arith.constant 0 : i32
    %495 = arith.cmpi ne, %494, %c0_i32_142 : i32
    scf.if %495 {
      %c0_143 = arith.constant 0 : index
      %c0_144 = arith.constant 0 : index
      %496 = vector.load %arg5[%c0_143, %c0_144] : memref<16x128xf32, #tpu.memory_space<vmem>>, vector<16x128xf32>
      %c0_145 = arith.constant 0 : index
      %c0_146 = arith.constant 0 : index
      %497 = vector.load %arg6[%c0_145, %c0_146] : memref<16x128xf32, #tpu.memory_space<vmem>>, vector<16x128xf32>
      %cst_147 = arith.constant 1.000000e-16 : f32
      %498 = vector.broadcast %cst_147 : f32 to vector<16x128xf32>
      %499 = arith.addf %497, %498 : vector<16x128xf32>
      %500 = arith.divf %496, %499 : vector<16x128xf32>
      %cst_148 = arith.constant 0.000000e+00 : f32
      %501 = vector.broadcast %cst_148 : f32 to vector<16x1xf32>
      %502 = vector.extract_strided_slice %496 {offsets = [0, 0], sizes = [16, 127], strides = [1, 1]} : vector<16x128xf32> to vector<16x127xf32>
      %503 = tpu.concatenate %501, %502 in 1 : vector<16x1xf32>, vector<16x127xf32> -> vector<16x128xf32>
      %504 = arith.subf %496, %503 : vector<16x128xf32>
      %c24_i32_149 = arith.constant 24 : i32
      %505 = vector.broadcast %c24_i32_149 : i32 to vector<16x128xi32>
      %506 = arith.cmpi eq, %14, %505 : vector<16x128xi32>
      %cst_150 = arith.constant 0.000000e+00 : f32
      %507 = vector.broadcast %cst_150 : f32 to vector<16x128xf32>
      %508 = arith.select %506, %496, %507 : vector<16x128xi1>, vector<16x128xf32>
      %cst_151 = arith.constant dense<0.000000e+00> : vector<16xf32>
      %509 = vector.multi_reduction <add>, %508, %cst_151 [1] : vector<16x128xf32> to vector<16xf32>
      %510 = vector.shape_cast %509 : vector<16xf32> to vector<16x1xf32>
      %511 = arith.mulf %504, %500 : vector<16x128xf32>
      %cst_152 = arith.constant dense<0.000000e+00> : vector<16xf32>
      %512 = vector.multi_reduction <add>, %511, %cst_152 [1] : vector<16x128xf32> to vector<16xf32>
      %513 = vector.shape_cast %512 : vector<16xf32> to vector<16x1xf32>
      %514 = arith.divf %513, %510 : vector<16x1xf32>
      %515 = vector.shape_cast %514 : vector<16x1xf32> to vector<16x1xf32>
      %516 = vector.broadcast %515 : vector<16x1xf32> to vector<16x128xf32>
      %c0_153 = arith.constant 0 : index
      %c0_154 = arith.constant 0 : index
      %517 = vector.load %arg4[%c0_153, %c0_154] : memref<16x128xf32, #tpu.memory_space<vmem>>, vector<16x128xf32>
      tpu.vector_store %arg4[%c0_153, %c0_154], %516 {strides = array<i32>} : memref<16x128xf32, #tpu.memory_space<vmem>>, vector<16x128xf32>,
    } else {
    }
    return
  }
  func.func @transform_0(%arg0: i32, %arg1: i32) -> (i32, i32) {
    %c0_i32 = arith.constant 0 : i32
    return %arg0, %arg1 : i32, i32
  }
  func.func @transform_1(%arg0: i32, %arg1: i32) -> (i32, i32) {
    %c0_i32 = arith.constant 0 : i32
    return %arg0, %arg1 : i32, i32
  }
  func.func @transform_2(%arg0: i32, %arg1: i32) -> (i32, i32) {
    %c0_i32 = arith.constant 0 : i32
    %c0_i32_0 = arith.constant 0 : i32
    return %arg0, %c0_i32 : i32, i32
  }
}

</mosaic_0001>

<llo_original>
// kernel: tpu_custom_call.1
$region0: #{tpu_custom_call.1}
  #allocation0 [shape = 'u32[]', space=smem, size = 0x4, offset = 0x4, fixed_abs, tag = 'smem constant byte address 0x4 - core index']
  #allocation1 [shape = 'u32[144,128]{1,0:T(1,128)}', space=vmem, size = 0x12000, scoped, tag = 'internal scratch']
  #allocation2 [shape = 'f32[16,128]{1,0:T(8,128)}', space=vmem, size = 0x2000, scoped, tag = 'scratch operand']
  #allocation3 [shape = 'f32[16,128]{1,0:T(8,128)}', space=vmem, size = 0x2000, scoped, tag = 'scratch operand']
  %s0 = inlined_call_operand.hbm [shape: f32[16,256], index: 0, kind: input, shape index: {}]
  %s1 = inlined_call_operand.hbm [shape: f32[16,256], index: 1, kind: input, shape index: {}]
  %s2 = inlined_call_operand.hbm [shape: f32[16,128], index: 2, kind: output, shape index: {}]
  %s3 = sld [smem:[#allocation0]]
  $region34: #{tpu_custom_call.1} parent=0
    _
  %s5 = ssub.s32 1, %s3
  %s6 = scalar_select 0, %s5, %s3
  $region1: #{tpu_custom_call.1} parent=0
    #allocation4 [shape = 'u8[16384]{0}', space=vmem, size = 0x4000, scoped, tag = 'input window, operand 0, single buffered']
    #allocation5 [shape = 's32[1]{0}', space=sflag, size = 0x4, scoped, tag = 'scoped memory for tpu_custom_call.1']
    #allocation6 [shape = 's32[1]{0}', space=sflag, size = 0x4, scoped, tag = 'scoped memory for tpu_custom_call.1']
    #allocation7 [shape = 'u8[16384]{0}', space=vmem, size = 0x4000, scoped, tag = 'input window, operand 1, single buffered']
    #allocation8 [shape = 's32[1]{0}', space=sflag, size = 0x4, scoped, tag = 'scoped memory for tpu_custom_call.1']
    #allocation9 [shape = 'u8[8192]{0}', space=vmem, size = 0x2000, scoped, tag = 'output window, operand 0, single buffered']
    %7 = vsyncpa [#allocation5], 0
    %8 = vsyncpa [#allocation8], 0
    %9 = vsyncpa [#allocation6], 0
    // Predicated region
    $region2: #{tpu_custom_call.1} parent=1 // pred_check
      _
    $region3: #{tpu_custom_call.1} parent=1 // pred_check_branch
      %11 = sbr.rel (0) target = $region5
    $region4: #{tpu_custom_call.1} parent=1 // pred_region
      %s13 = ssub.s32 512, 512
      %14 = vsyncadd [#allocation5], %s13
      %s15 = sshll.u32 [#allocation4], 4
      %s16 = int_to_ptr.vmem [resolvable:$true] %s15
      %21 = dma.hbm_to_vmem [thread:$0]  %s0, 512, %s16, [#allocation5], 256, 256, 16
    $region5: #{tpu_custom_call.1} parent=1 // pred_fallthru
      _
    // Predicated region
    $region6: #{tpu_custom_call.1} parent=1 // pred_check
      _
    $region7: #{tpu_custom_call.1} parent=1 // pred_check_branch
      %23 = sbr.rel (0) target = $region9
    $region8: #{tpu_custom_call.1} parent=1 // pred_region
      %s25 = ssub.s32 512, 512
      %26 = vsyncadd [#allocation8], %s25
      %s27 = sshll.u32 [#allocation7], 4
      %s28 = int_to_ptr.vmem [resolvable:$true] %s27
      %33 = dma.hbm_to_vmem [thread:$0]  %s1, 512, %s28, [#allocation8], 256, 256, 16
    $region9: #{tpu_custom_call.1} parent=1 // pred_fallthru
      _
    // Predicated region
    $region10: #{tpu_custom_call.1} parent=1 // pred_check
      _
    $region11: #{tpu_custom_call.1} parent=1 // pred_check_branch
      %35 = sbr.rel (0) target = $region13
    $region12: #{tpu_custom_call.1} parent=1 // pred_region
      %36 = dma.done [#allocation5], 512
    $region13: #{tpu_custom_call.1} parent=1 // pred_fallthru
      _
    // Predicated region
    $region14: #{tpu_custom_call.1} parent=1 // pred_check
      _
    $region15: #{tpu_custom_call.1} parent=1 // pred_check_branch
      %38 = sbr.rel (0) target = $region17
    $region16: #{tpu_custom_call.1} parent=1 // pred_region
      %39 = dma.done [#allocation8], 512
    $region17: #{tpu_custom_call.1} parent=1 // pred_fallthru
      _
    %p40 = scmp.eq.s32.totalorder 0, 0
    // Predicated region
    $region18: #{tpu_custom_call.1} parent=1 // pred_check
      %p41 = pneg %p40
    $region19: #{tpu_custom_call.1} parent=1 // pred_check_branch
      %43 = sbr.rel (%p41) target = $region21
    $region20: #{tpu_custom_call.1} parent=1 // pred_region
      %44 = vst [vmem:[#allocation2] sm:$0xff] 0.0
      %45 = vst [vmem:[#allocation2 + $0x8] sm:$0xff] 0.0
      %46 = vst [vmem:[#allocation3] sm:$0xff] 0.0
      %47 = vst [vmem:[#allocation3 + $0x8] sm:$0xff] 0.0
    $region21: #{tpu_custom_call.1} parent=1 // pred_fallthru
      _
    %v48 = vld [vmem:[#allocation4] sm:$0xff]
    %v49 = vld [vmem:[#allocation4 + $0x8] sm:$0xff]
    %v50 = vld [vmem:[#allocation4 + $0x10] sm:$0xff]
    %v51 = vld [vmem:[#allocation4 + $0x18] sm:$0xff]
    %v52 = vld [vmem:[#allocation7] sm:$0xff]
    %v53 = vld [vmem:[#allocation7 + $0x8] sm:$0xff]
    %v54 = vld [vmem:[#allocation7 + $0x10] sm:$0xff]
    %v55 = vld [vmem:[#allocation7 + $0x18] sm:$0xff]
    %v56 = vmul.f32 %v48, 2.0
    %v57 = vmul.f32 %v49, 2.0
    %v58 = vmul.f32 %v50, 2.0
    %v59 = vmul.f32 %v51, 2.0
    %v60 = vsub.f32 2.0001, %v56
    %v61 = vsub.f32 2.0001, %v57
    %v62 = vsub.f32 2.0001, %v58
    %v63 = vsub.f32 2.0001, %v59
    %v64 = vrsqrt.pop %v60
    %v65 = vmul.f32 %v60, %v64
    %vm66 = vcmp.eq.f32.partialorder %v60, inf
    %v67 = vsel %vm66, %v60, %v65
    %vm68 = vcmp.eq.f32.partialorder %v60, 0.0
    %v69 = vand.u32 %v60, 2147483648
    %v70 = vsel %vm68, %v69, %v67
    %v71 = vrsqrt.pop %v61
    %v72 = vmul.f32 %v61, %v71
    %vm73 = vcmp.eq.f32.partialorder %v61, inf
    %v74 = vsel %vm73, %v61, %v72
    %vm75 = vcmp.eq.f32.partialorder %v61, 0.0
    %v76 = vand.u32 %v61, 2147483648
    %v77 = vsel %vm75, %v76, %v74
    %v78 = vrsqrt.pop %v62
    %v79 = vmul.f32 %v62, %v78
    %vm80 = vcmp.eq.f32.partialorder %v62, inf
    %v81 = vsel %vm80, %v62, %v79
    %vm82 = vcmp.eq.f32.partialorder %v62, 0.0
    %v83 = vand.u32 %v62, 2147483648
    %v84 = vsel %vm82, %v83, %v81
    %v85 = vrsqrt.pop %v63
    %v86 = vmul.f32 %v63, %v85
    %vm87 = vcmp.eq.f32.partialorder %v63, inf
    %v88 = vsel %vm87, %v63, %v86
    %vm89 = vcmp.eq.f32.partialorder %v63, 0.0
    %v90 = vand.u32 %v63, 2147483648
    %v91 = vsel %vm89, %v90, %v88
    %v92 = vsub.f32 1.0, %v70
    %v93 = vsub.f32 1.0, %v77
    %v94 = vsub.f32 1.0, %v84
    %v95 = vsub.f32 1.0, %v91
    %v96 = vmul.f32 %v92, 24.0
    %v97 = vmul.f32 %v93, 24.0
    %v98 = vmul.f32 %v94, 24.0
    %v99 = vmul.f32 %v95, 24.0
    %v100 = vlaneseq
    %v101 = vand.u32 %v100, 127
    %v102 = vadd.f32 %v96, -23.0
    %v103 = vadd.f32 %v97, -23.0
    %v104 = vadd.f32 %v98, -23.0
    %v105 = vadd.f32 %v99, -23.0
    %v106 = vmax.f32 %v102, 0.0
    %v107 = vmax.f32 %v103, 0.0
    %v108 = vmax.f32 %v104, 0.0
    %v109 = vmax.f32 %v105, 0.0
    %v110 = vmin.f32 %v106, 1.0
    %v111 = vmin.f32 %v107, 1.0
    %v112 = vmin.f32 %v108, 1.0
    %v113 = vmin.f32 %v109, 1.0
    %v114 = vadd.f32 %v110, %v111
    %115 = vadd.xlane.f32.xlu0 %v114
    %v116 = vpop.xlane.xlu0 %115
    %v117 = vadd.f32 %v112, %v113
    %118 = vadd.xlane.f32.xlu0 %v117
    %v119 = vpop.xlane.xlu0 %118
    %v120 = vmul.f32 %v110, %v52
    %v121 = vmul.f32 %v111, %v53
    %v122 = vmul.f32 %v112, %v54
    %v123 = vmul.f32 %v113, %v55
    %v124 = vadd.f32 %v120, %v121
    %125 = vadd.xlane.f32.xlu0 %v124
    %v126 = vpop.xlane.xlu0 %125
    %v127 = vadd.f32 %v122, %v123
    %128 = vadd.xlane.f32.xlu0 %v127
    %v129 = vpop.xlane.xlu0 %128
    %vm130 = vcmp.eq.s32.totalorder %v101, 0
    %v131 = vsel %vm130, %v116, 0.0
    %v132 = vsel %vm130, %v119, 0.0
    %v133 = vsel %vm130, %v126, 0.0
    %v134 = vsel %vm130, %v129, 0.0
    %v135 = vadd.f32 %v96, -22.0
    %v136 = vadd.f32 %v97, -22.0
    %v137 = vadd.f32 %v98, -22.0
    %v138 = vadd.f32 %v99, -22.0
    %v139 = vmax.f32 %v135, 0.0
    %v140 = vmax.f32 %v136, 0.0
    %v141 = vmax.f32 %v137, 0.0
    %v142 = vmax.f32 %v138, 0.0
    %v143 = vmin.f32 %v139, 1.0
    %v144 = vmin.f32 %v140, 1.0
    %v145 = vmin.f32 %v141, 1.0
    %v146 = vmin.f32 %v142, 1.0
    %v147 = vadd.f32 %v143, %v144
    %148 = vadd.xlane.f32.xlu0 %v147
    %v149 = vpop.xlane.xlu0 %148
    %v150 = vadd.f32 %v145, %v146
    %151 = vadd.xlane.f32.xlu0 %v150
    %v152 = vpop.xlane.xlu0 %151
    %v153 = vmul.f32 %v143, %v52
    %v154 = vmul.f32 %v144, %v53
    %v155 = vmul.f32 %v145, %v54
    %v156 = vmul.f32 %v146, %v55
    %v157 = vadd.f32 %v153, %v154
    %158 = vadd.xlane.f32.xlu0 %v157
    %v159 = vpop.xlane.xlu0 %158
    %v160 = vadd.f32 %v155, %v156
    %161 = vadd.xlane.f32.xlu0 %v160
    %v162 = vpop.xlane.xlu0 %161
    %vm163 = vcmp.eq.s32.totalorder %v101, 1
    %v164 = vsel %vm163, %v149, %v131
    %v165 = vsel %vm163, %v152, %v132
    %v166 = vsel %vm163, %v159, %v133
    %v167 = vsel %vm163, %v162, %v134
    %v168 = vadd.f32 %v96, -21.0
    %v169 = vadd.f32 %v97, -21.0
    %v170 = vadd.f32 %v98, -21.0
    %v171 = vadd.f32 %v99, -21.0
    %v172 = vmax.f32 %v168, 0.0
    %v173 = vmax.f32 %v169, 0.0
    %v174 = vmax.f32 %v170, 0.0
    %v175 = vmax.f32 %v171, 0.0
    %v176 = vmin.f32 %v172, 1.0
    %v177 = vmin.f32 %v173, 1.0
    %v178 = vmin.f32 %v174, 1.0
    %v179 = vmin.f32 %v175, 1.0
    %v180 = vadd.f32 %v176, %v177
    %181 = vadd.xlane.f32.xlu0 %v180
    %v182 = vpop.xlane.xlu0 %181
    %v183 = vadd.f32 %v178, %v179
    %184 = vadd.xlane.f32.xlu0 %v183
    %v185 = vpop.xlane.xlu0 %184
    %v186 = vmul.f32 %v176, %v52
    %v187 = vmul.f32 %v177, %v53
    %v188 = vmul.f32 %v178, %v54
    %v189 = vmul.f32 %v179, %v55
    %v190 = vadd.f32 %v186, %v187
    %191 = vadd.xlane.f32.xlu0 %v190
    %v192 = vpop.xlane.xlu0 %191
    %v193 = vadd.f32 %v188, %v189
    %194 = vadd.xlane.f32.xlu0 %v193
    %v195 = vpop.xlane.xlu0 %194
    %vm196 = vcmp.eq.s32.totalorder %v101, 2
    %v197 = vsel %vm196, %v182, %v164
    %v198 = vsel %vm196, %v185, %v165
    %v199 = vsel %vm196, %v192, %v166
    %v200 = vsel %vm196, %v195, %v167
    %v201 = vadd.f32 %v96, -20.0
    %v202 = vadd.f32 %v97, -20.0
    %v203 = vadd.f32 %v98, -20.0
    %v204 = vadd.f32 %v99, -20.0
    %v205 = vmax.f32 %v201, 0.0
    %v206 = vmax.f32 %v202, 0.0
    %v207 = vmax.f32 %v203, 0.0
    %v208 = vmax.f32 %v204, 0.0
    %v209 = vmin.f32 %v205, 1.0
    %v210 = vmin.f32 %v206, 1.0
    %v211 = vmin.f32 %v207, 1.0
    %v212 = vmin.f32 %v208, 1.0
    %v213 = vadd.f32 %v209, %v210
    %214 = vadd.xlane.f32.xlu0 %v213
    %v215 = vpop.xlane.xlu0 %214
    %v216 = vadd.f32 %v211, %v212
    %217 = vadd.xlane.f32.xlu0 %v216
    %v218 = vpop.xlane.xlu0 %217
    %v219 = vmul.f32 %v209, %v52
    %v220 = vmul.f32 %v210, %v53
    %v221 = vmul.f32 %v211, %v54
    %v222 = vmul.f32 %v212, %v55
    %v223 = vadd.f32 %v219, %v220
    %224 = vadd.xlane.f32.xlu0 %v223
    %v225 = vpop.xlane.xlu0 %224
    %v226 = vadd.f32 %v221, %v222
    %227 = vadd.xlane.f32.xlu0 %v226
    %v228 = vpop.xlane.xlu0 %227
    %vm229 = vcmp.eq.s32.totalorder %v101, 3
    %v230 = vsel %vm229, %v215, %v197
    %v231 = vsel %vm229, %v218, %v198
    %v232 = vsel %vm229, %v225, %v199
    %v233 = vsel %vm229, %v228, %v200
    %v234 = vadd.f32 %v96, -19.0
    %v235 = vadd.f32 %v97, -19.0
    %v236 = vadd.f32 %v98, -19.0
    %v237 = vadd.f32 %v99, -19.0
    %v238 = vmax.f32 %v234, 0.0
    %v239 = vmax.f32 %v235, 0.0
    %v240 = vmax.f32 %v236, 0.0
    %v241 = vmax.f32 %v237, 0.0
    %v242 = vmin.f32 %v238, 1.0
    %v243 = vmin.f32 %v239, 1.0
    %v244 = vmin.f32 %v240, 1.0
    %v245 = vmin.f32 %v241, 1.0
    %v246 = vadd.f32 %v242, %v243
    %247 = vadd.xlane.f32.xlu0 %v246
    %v248 = vpop.xlane.xlu0 %247
    %v249 = vadd.f32 %v244, %v245
    %250 = vadd.xlane.f32.xlu0 %v249
    %v251 = vpop.xlane.xlu0 %250
    %v252 = vmul.f32 %v242, %v52
    %v253 = vmul.f32 %v243, %v53
    %v254 = vmul.f32 %v244, %v54
    %v255 = vmul.f32 %v245, %v55
    %v256 = vadd.f32 %v252, %v253
    %257 = vadd.xlane.f32.xlu0 %v256
    %v258 = vpop.xlane.xlu0 %257
    %v259 = vadd.f32 %v254, %v255
    %260 = vadd.xlane.f32.xlu0 %v259
    %v261 = vpop.xlane.xlu0 %260
    %vm262 = vcmp.eq.s32.totalorder %v101, 4
    %v263 = vsel %vm262, %v248, %v230
    %v264 = vsel %vm262, %v251, %v231
    %v265 = vsel %vm262, %v258, %v232
    %v266 = vsel %vm262, %v261, %v233
    %v267 = vadd.f32 %v96, -18.0
    %v268 = vadd.f32 %v97, -18.0
    %v269 = vadd.f32 %v98, -18.0
    %v270 = vadd.f32 %v99, -18.0
    %v271 = vmax.f32 %v267, 0.0
    %v272 = vmax.f32 %v268, 0.0
    %v273 = vmax.f32 %v269, 0.0
    %v274 = vmax.f32 %v270, 0.0
    %v275 = vmin.f32 %v271, 1.0
    %v276 = vmin.f32 %v272, 1.0
    %v277 = vmin.f32 %v273, 1.0
    %v278 = vmin.f32 %v274, 1.0
    %v279 = vadd.f32 %v275, %v276
    %280 = vadd.xlane.f32.xlu0 %v279
    %v281 = vpop.xlane.xlu0 %280
    %v282 = vadd.f32 %v277, %v278
    %283 = vadd.xlane.f32.xlu0 %v282
    %v284 = vpop.xlane.xlu0 %283
    %v285 = vmul.f32 %v275, %v52
    %v286 = vmul.f32 %v276, %v53
    %v287 = vmul.f32 %v277, %v54
    %v288 = vmul.f32 %v278, %v55
    %v289 = vadd.f32 %v285, %v286
    %290 = vadd.xlane.f32.xlu0 %v289
    %v291 = vpop.xlane.xlu0 %290
    %v292 = vadd.f32 %v287, %v288
    %293 = vadd.xlane.f32.xlu0 %v292
    %v294 = vpop.xlane.xlu0 %293
    %vm295 = vcmp.eq.s32.totalorder %v101, 5
    %v296 = vsel %vm295, %v281, %v263
    %v297 = vsel %vm295, %v284, %v264
    %v298 = vsel %vm295, %v291, %v265
    %v299 = vsel %vm295, %v294, %v266
    %v300 = vadd.f32 %v96, -17.0
    %v301 = vadd.f32 %v97, -17.0
    %v302 = vadd.f32 %v98, -17.0
    %v303 = vadd.f32 %v99, -17.0
    %v304 = vmax.f32 %v300, 0.0
    %v305 = vmax.f32 %v301, 0.0
    %v306 = vmax.f32 %v302, 0.0
    %v307 = vmax.f32 %v303, 0.0
    %v308 = vmin.f32 %v304, 1.0
    %v309 = vmin.f32 %v305, 1.0
    %v310 = vmin.f32 %v306, 1.0
    %v311 = vmin.f32 %v307, 1.0
    %v312 = vadd.f32 %v308, %v309
    %313 = vadd.xlane.f32.xlu0 %v312
    %v314 = vpop.xlane.xlu0 %313
    %v315 = vadd.f32 %v310, %v311
    %316 = vadd.xlane.f32.xlu0 %v315
    %v317 = vpop.xlane.xlu0 %316
    %v318 = vmul.f32 %v308, %v52
    %v319 = vmul.f32 %v309, %v53
    %v320 = vmul.f32 %v310, %v54
    %v321 = vmul.f32 %v311, %v55
    %v322 = vadd.f32 %v318, %v319
    %323 = vadd.xlane.f32.xlu0 %v322
    %v324 = vpop.xlane.xlu0 %323
    %v325 = vadd.f32 %v320, %v321
    %326 = vadd.xlane.f32.xlu0 %v325
    %v327 = vpop.xlane.xlu0 %326
    %vm328 = vcmp.eq.s32.totalorder %v101, 6
    %v329 = vsel %vm328, %v314, %v296
    %v330 = vsel %vm328, %v317, %v297
    %v331 = vsel %vm328, %v324, %v298
    %v332 = vsel %vm328, %v327, %v299
    %v333 = vadd.f32 %v96, -16.0
    %v334 = vadd.f32 %v97, -16.0
    %v335 = vadd.f32 %v98, -16.0
    %v336 = vadd.f32 %v99, -16.0
    %v337 = vmax.f32 %v333, 0.0
    %v338 = vmax.f32 %v334, 0.0
    %v339 = vmax.f32 %v335, 0.0
    %v340 = vmax.f32 %v336, 0.0
    %v341 = vmin.f32 %v337, 1.0
    %v342 = vmin.f32 %v338, 1.0
    %v343 = vmin.f32 %v339, 1.0
    %v344 = vmin.f32 %v340, 1.0
    %v345 = vadd.f32 %v341, %v342
    %346 = vadd.xlane.f32.xlu0 %v345
    %v347 = vpop.xlane.xlu0 %346
    %v348 = vadd.f32 %v343, %v344
    %349 = vadd.xlane.f32.xlu0 %v348
    %v350 = vpop.xlane.xlu0 %349
    %v351 = vmul.f32 %v341, %v52
    %v352 = vmul.f32 %v342, %v53
    %v353 = vmul.f32 %v343, %v54
    %v354 = vmul.f32 %v344, %v55
    %v355 = vadd.f32 %v351, %v352
    %356 = vadd.xlane.f32.xlu0 %v355
    %v357 = vpop.xlane.xlu0 %356
    %v358 = vadd.f32 %v353, %v354
    %359 = vadd.xlane.f32.xlu0 %v358
    %v360 = vpop.xlane.xlu0 %359
    %vm361 = vcmp.eq.s32.totalorder %v101, 7
    %v362 = vsel %vm361, %v347, %v329
    %v363 = vsel %vm361, %v350, %v330
    %v364 = vsel %vm361, %v357, %v331
    %v365 = vsel %vm361, %v360, %v332
    %v366 = vadd.f32 %v96, -15.0
    %v367 = vadd.f32 %v97, -15.0
    %v368 = vadd.f32 %v98, -15.0
    %v369 = vadd.f32 %v99, -15.0
    %v370 = vmax.f32 %v366, 0.0
    %v371 = vmax.f32 %v367, 0.0
    %v372 = vmax.f32 %v368, 0.0
    %v373 = vmax.f32 %v369, 0.0
    %v374 = vmin.f32 %v370, 1.0
    %v375 = vmin.f32 %v371, 1.0
    %v376 = vmin.f32 %v372, 1.0
    %v377 = vmin.f32 %v373, 1.0
    %v378 = vadd.f32 %v374, %v375
    %379 = vadd.xlane.f32.xlu0 %v378
    %v380 = vpop.xlane.xlu0 %379
    %v381 = vadd.f32 %v376, %v377
    %382 = vadd.xlane.f32.xlu0 %v381
    %v383 = vpop.xlane.xlu0 %382
    %v384 = vmul.f32 %v374, %v52
    %v385 = vmul.f32 %v375, %v53
    %v386 = vmul.f32 %v376, %v54
    %v387 = vmul.f32 %v377, %v55
    %v388 = vadd.f32 %v384, %v385
    %389 = vadd.xlane.f32.xlu0 %v388
    %v390 = vpop.xlane.xlu0 %389
    %v391 = vadd.f32 %v386, %v387
    %392 = vadd.xlane.f32.xlu0 %v391
    %v393 = vpop.xlane.xlu0 %392
    %vm394 = vcmp.eq.s32.totalorder %v101, 8
    %v395 = vsel %vm394, %v380, %v362
    %v396 = vsel %vm394, %v383, %v363
    %v397 = vsel %vm394, %v390, %v364
    %v398 = vsel %vm394, %v393, %v365
    %v399 = vadd.f32 %v96, -14.0
    %v400 = vadd.f32 %v97, -14.0
    %v401 = vadd.f32 %v98, -14.0
    %v402 = vadd.f32 %v99, -14.0
    %v403 = vmax.f32 %v399, 0.0
    %v404 = vmax.f32 %v400, 0.0
    %v405 = vmax.f32 %v401, 0.0
    %v406 = vmax.f32 %v402, 0.0
    %v407 = vmin.f32 %v403, 1.0
    %v408 = vmin.f32 %v404, 1.0
    %v409 = vmin.f32 %v405, 1.0
    %v410 = vmin.f32 %v406, 1.0
    %v411 = vadd.f32 %v407, %v408
    %412 = vadd.xlane.f32.xlu0 %v411
    %v413 = vpop.xlane.xlu0 %412
    %v414 = vadd.f32 %v409, %v410
    %415 = vadd.xlane.f32.xlu0 %v414
    %v416 = vpop.xlane.xlu0 %415
    %v417 = vmul.f32 %v407, %v52
    %v418 = vmul.f32 %v408, %v53
    %v419 = vmul.f32 %v409, %v54
    %v420 = vmul.f32 %v410, %v55
    %v421 = vadd.f32 %v417, %v418
    %422 = vadd.xlane.f32.xlu0 %v421
    %v423 = vpop.xlane.xlu0 %422
    %v424 = vadd.f32 %v419, %v420
    %425 = vadd.xlane.f32.xlu0 %v424
    %v426 = vpop.xlane.xlu0 %425
    %vm427 = vcmp.eq.s32.totalorder %v101, 9
    %v428 = vsel %vm427, %v413, %v395
    %v429 = vsel %vm427, %v416, %v396
    %v430 = vsel %vm427, %v423, %v397
    %v431 = vsel %vm427, %v426, %v398
    %v432 = vadd.f32 %v96, -13.0
    %v433 = vadd.f32 %v97, -13.0
    %v434 = vadd.f32 %v98, -13.0
    %v435 = vadd.f32 %v99, -13.0
    %v436 = vmax.f32 %v432, 0.0
    %v437 = vmax.f32 %v433, 0.0
    %v438 = vmax.f32 %v434, 0.0
    %v439 = vmax.f32 %v435, 0.0
    %v440 = vmin.f32 %v436, 1.0
    %v441 = vmin.f32 %v437, 1.0
    %v442 = vmin.f32 %v438, 1.0
    %v443 = vmin.f32 %v439, 1.0
    %v444 = vadd.f32 %v440, %v441
    %445 = vadd.xlane.f32.xlu0 %v444
    %v446 = vpop.xlane.xlu0 %445
    %v447 = vadd.f32 %v442, %v443
    %448 = vadd.xlane.f32.xlu0 %v447
    %v449 = vpop.xlane.xlu0 %448
    %v450 = vmul.f32 %v440, %v52
    %v451 = vmul.f32 %v441, %v53
    %v452 = vmul.f32 %v442, %v54
    %v453 = vmul.f32 %v443, %v55
    %v454 = vadd.f32 %v450, %v451
    %455 = vadd.xlane.f32.xlu0 %v454
    %v456 = vpop.xlane.xlu0 %455
    %v457 = vadd.f32 %v452, %v453
    %458 = vadd.xlane.f32.xlu0 %v457
    %v459 = vpop.xlane.xlu0 %458
    %vm460 = vcmp.eq.s32.totalorder %v101, 10
    %v461 = vsel %vm460, %v446, %v428
    %v462 = vsel %vm460, %v449, %v429
    %v463 = vsel %vm460, %v456, %v430
    %v464 = vsel %vm460, %v459, %v431
    %v465 = vadd.f32 %v96, -12.0
    %v466 = vadd.f32 %v97, -12.0
    %v467 = vadd.f32 %v98, -12.0
    %v468 = vadd.f32 %v99, -12.0
    %v469 = vmax.f32 %v465, 0.0
    %v470 = vmax.f32 %v466, 0.0
    %v471 = vmax.f32 %v467, 0.0
    %v472 = vmax.f32 %v468, 0.0
    %v473 = vmin.f32 %v469, 1.0
    %v474 = vmin.f32 %v470, 1.0
    %v475 = vmin.f32 %v471, 1.0
    %v476 = vmin.f32 %v472, 1.0
    %v477 = vadd.f32 %v473, %v474
    %478 = vadd.xlane.f32.xlu0 %v477
    %v479 = vpop.xlane.xlu0 %478
    %v480 = vadd.f32 %v475, %v476
    %481 = vadd.xlane.f32.xlu0 %v480
    %v482 = vpop.xlane.xlu0 %481
    %v483 = vmul.f32 %v473, %v52
    %v484 = vmul.f32 %v474, %v53
    %v485 = vmul.f32 %v475, %v54
    %v486 = vmul.f32 %v476, %v55
    %v487 = vadd.f32 %v483, %v484
    %488 = vadd.xlane.f32.xlu0 %v487
    %v489 = vpop.xlane.xlu0 %488
    %v490 = vadd.f32 %v485, %v486
    %491 = vadd.xlane.f32.xlu0 %v490
    %v492 = vpop.xlane.xlu0 %491
    %vm493 = vcmp.eq.s32.totalorder %v101, 11
    %v494 = vsel %vm493, %v479, %v461
    %v495 = vsel %vm493, %v482, %v462
    %v496 = vsel %vm493, %v489, %v463
    %v497 = vsel %vm493, %v492, %v464
    %v498 = vadd.f32 %v96, -11.0
    %v499 = vadd.f32 %v97, -11.0
    %v500 = vadd.f32 %v98, -11.0
    %v501 = vadd.f32 %v99, -11.0
    %v502 = vmax.f32 %v498, 0.0
    %v503 = vmax.f32 %v499, 0.0
    %v504 = vmax.f32 %v500, 0.0
    %v505 = vmax.f32 %v501, 0.0
    %v506 = vmin.f32 %v502, 1.0
    %v507 = vmin.f32 %v503, 1.0
    %v508 = vmin.f32 %v504, 1.0
    %v509 = vmin.f32 %v505, 1.0
    %v510 = vadd.f32 %v506, %v507
    %511 = vadd.xlane.f32.xlu0 %v510
    %v512 = vpop.xlane.xlu0 %511
    %v513 = vadd.f32 %v508, %v509
    %514 = vadd.xlane.f32.xlu0 %v513
    %v515 = vpop.xlane.xlu0 %514
    %v516 = vmul.f32 %v506, %v52
    %v517 = vmul.f32 %v507, %v53
    %v518 = vmul.f32 %v508, %v54
    %v519 = vmul.f32 %v509, %v55
    %v520 = vadd.f32 %v516, %v517
    %521 = vadd.xlane.f32.xlu0 %v520
    %v522 = vpop.xlane.xlu0 %521
    %v523 = vadd.f32 %v518, %v519
    %524 = vadd.xlane.f32.xlu0 %v523
    %v525 = vpop.xlane.xlu0 %524
    %vm526 = vcmp.eq.s32.totalorder %v101, 12
    %v527 = vsel %vm526, %v512, %v494
    %v528 = vsel %vm526, %v515, %v495
    %v529 = vsel %vm526, %v522, %v496
    %v530 = vsel %vm526, %v525, %v497
    %v531 = vadd.f32 %v96, -10.0
    %v532 = vadd.f32 %v97, -10.0
    %v533 = vadd.f32 %v98, -10.0
    %v534 = vadd.f32 %v99, -10.0
    %v535 = vmax.f32 %v531, 0.0
    %v536 = vmax.f32 %v532, 0.0
    %v537 = vmax.f32 %v533, 0.0
    %v538 = vmax.f32 %v534, 0.0
    %v539 = vmin.f32 %v535, 1.0
    %v540 = vmin.f32 %v536, 1.0
    %v541 = vmin.f32 %v537, 1.0
    %v542 = vmin.f32 %v538, 1.0
    %v543 = vadd.f32 %v539, %v540
    %544 = vadd.xlane.f32.xlu0 %v543
    %v545 = vpop.xlane.xlu0 %544
    %v546 = vadd.f32 %v541, %v542
    %547 = vadd.xlane.f32.xlu0 %v546
    %v548 = vpop.xlane.xlu0 %547
    %v549 = vmul.f32 %v539, %v52
    %v550 = vmul.f32 %v540, %v53
    %v551 = vmul.f32 %v541, %v54
    %v552 = vmul.f32 %v542, %v55
    %v553 = vadd.f32 %v549, %v550
    %554 = vadd.xlane.f32.xlu0 %v553
    %v555 = vpop.xlane.xlu0 %554
    %v556 = vadd.f32 %v551, %v552
    %557 = vadd.xlane.f32.xlu0 %v556
    %v558 = vpop.xlane.xlu0 %557
    %vm559 = vcmp.eq.s32.totalorder %v101, 13
    %v560 = vsel %vm559, %v545, %v527
    %v561 = vsel %vm559, %v548, %v528
    %v562 = vsel %vm559, %v555, %v529
    %v563 = vsel %vm559, %v558, %v530
    %v564 = vadd.f32 %v96, -9.0
    %v565 = vadd.f32 %v97, -9.0
    %v566 = vadd.f32 %v98, -9.0
    %v567 = vadd.f32 %v99, -9.0
    %v568 = vmax.f32 %v564, 0.0
    %v569 = vmax.f32 %v565, 0.0
    %v570 = vmax.f32 %v566, 0.0
    %v571 = vmax.f32 %v567, 0.0
    %v572 = vmin.f32 %v568, 1.0
    %v573 = vmin.f32 %v569, 1.0
    %v574 = vmin.f32 %v570, 1.0
    %v575 = vmin.f32 %v571, 1.0
    %v576 = vadd.f32 %v572, %v573
    %577 = vadd.xlane.f32.xlu0 %v576
    %v578 = vpop.xlane.xlu0 %577
    %v579 = vadd.f32 %v574, %v575
    %580 = vadd.xlane.f32.xlu0 %v579
    %v581 = vpop.xlane.xlu0 %580
    %v582 = vmul.f32 %v572, %v52
    %v583 = vmul.f32 %v573, %v53
    %v584 = vmul.f32 %v574, %v54
    %v585 = vmul.f32 %v575, %v55
    %v586 = vadd.f32 %v582, %v583
    %587 = vadd.xlane.f32.xlu0 %v586
    %v588 = vpop.xlane.xlu0 %587
    %v589 = vadd.f32 %v584, %v585
    %590 = vadd.xlane.f32.xlu0 %v589
    %v591 = vpop.xlane.xlu0 %590
    %vm592 = vcmp.eq.s32.totalorder %v101, 14
    %v593 = vsel %vm592, %v578, %v560
    %v594 = vsel %vm592, %v581, %v561
    %v595 = vsel %vm592, %v588, %v562
    %v596 = vsel %vm592, %v591, %v563
    %v597 = vadd.f32 %v96, -8.0
    %v598 = vadd.f32 %v97, -8.0
    %v599 = vadd.f32 %v98, -8.0
    %v600 = vadd.f32 %v99, -8.0
    %v601 = vmax.f32 %v597, 0.0
    %v602 = vmax.f32 %v598, 0.0
    %v603 = vmax.f32 %v599, 0.0
    %v604 = vmax.f32 %v600, 0.0
    %v605 = vmin.f32 %v601, 1.0
    %v606 = vmin.f32 %v602, 1.0
    %v607 = vmin.f32 %v603, 1.0
    %v608 = vmin.f32 %v604, 1.0
    %v609 = vadd.f32 %v605, %v606
    %610 = vadd.xlane.f32.xlu0 %v609
    %v611 = vpop.xlane.xlu0 %610
    %v612 = vadd.f32 %v607, %v608
    %613 = vadd.xlane.f32.xlu0 %v612
    %v614 = vpop.xlane.xlu0 %613
    %v615 = vmul.f32 %v605, %v52
    %v616 = vmul.f32 %v606, %v53
    %v617 = vmul.f32 %v607, %v54
    %v618 = vmul.f32 %v608, %v55
    %v619 = vadd.f32 %v615, %v616
    %620 = vadd.xlane.f32.xlu0 %v619
    %v621 = vpop.xlane.xlu0 %620
    %v622 = vadd.f32 %v617, %v618
    %623 = vadd.xlane.f32.xlu0 %v622
    %v624 = vpop.xlane.xlu0 %623
    %vm625 = vcmp.eq.s32.totalorder %v101, 15
    %v626 = vsel %vm625, %v611, %v593
    %v627 = vsel %vm625, %v614, %v594
    %v628 = vsel %vm625, %v621, %v595
    %v629 = vsel %vm625, %v624, %v596
    %v630 = vadd.f32 %v96, -7.0
    %v631 = vadd.f32 %v97, -7.0
    %v632 = vadd.f32 %v98, -7.0
    %v633 = vadd.f32 %v99, -7.0
    %v634 = vmax.f32 %v630, 0.0
    %v635 = vmax.f32 %v631, 0.0
    %v636 = vmax.f32 %v632, 0.0
    %v637 = vmax.f32 %v633, 0.0
    %v638 = vmin.f32 %v634, 1.0
    %v639 = vmin.f32 %v635, 1.0
    %v640 = vmin.f32 %v636, 1.0
    %v641 = vmin.f32 %v637, 1.0
    %v642 = vadd.f32 %v638, %v639
    %643 = vadd.xlane.f32.xlu0 %v642
    %v644 = vpop.xlane.xlu0 %643
    %v645 = vadd.f32 %v640, %v641
    %646 = vadd.xlane.f32.xlu0 %v645
    %v647 = vpop.xlane.xlu0 %646
    %v648 = vmul.f32 %v638, %v52
    %v649 = vmul.f32 %v639, %v53
    %v650 = vmul.f32 %v640, %v54
    %v651 = vmul.f32 %v641, %v55
    %v652 = vadd.f32 %v648, %v649
    %653 = vadd.xlane.f32.xlu0 %v652
    %v654 = vpop.xlane.xlu0 %653
    %v655 = vadd.f32 %v650, %v651
    %656 = vadd.xlane.f32.xlu0 %v655
    %v657 = vpop.xlane.xlu0 %656
    %vm658 = vcmp.eq.s32.totalorder %v101, 16
    %v659 = vsel %vm658, %v644, %v626
    %v660 = vsel %vm658, %v647, %v627
    %v661 = vsel %vm658, %v654, %v628
    %v662 = vsel %vm658, %v657, %v629
    %v663 = vadd.f32 %v96, -6.0
    %v664 = vadd.f32 %v97, -6.0
    %v665 = vadd.f32 %v98, -6.0
    %v666 = vadd.f32 %v99, -6.0
    %v667 = vmax.f32 %v663, 0.0
    %v668 = vmax.f32 %v664, 0.0
    %v669 = vmax.f32 %v665, 0.0
    %v670 = vmax.f32 %v666, 0.0
    %v671 = vmin.f32 %v667, 1.0
    %v672 = vmin.f32 %v668, 1.0
    %v673 = vmin.f32 %v669, 1.0
    %v674 = vmin.f32 %v670, 1.0
    %v675 = vadd.f32 %v671, %v672
    %676 = vadd.xlane.f32.xlu0 %v675
    %v677 = vpop.xlane.xlu0 %676
    %v678 = vadd.f32 %v673, %v674
    %679 = vadd.xlane.f32.xlu0 %v678
    %v680 = vpop.xlane.xlu0 %679
    %v681 = vmul.f32 %v671, %v52
    %v682 = vmul.f32 %v672, %v53
    %v683 = vmul.f32 %v673, %v54
    %v684 = vmul.f32 %v674, %v55
    %v685 = vadd.f32 %v681, %v682
    %686 = vadd.xlane.f32.xlu0 %v685
    %v687 = vpop.xlane.xlu0 %686
    %v688 = vadd.f32 %v683, %v684
    %689 = vadd.xlane.f32.xlu0 %v688
    %v690 = vpop.xlane.xlu0 %689
    %vm691 = vcmp.eq.s32.totalorder %v101, 17
    %v692 = vsel %vm691, %v677, %v659
    %v693 = vsel %vm691, %v680, %v660
    %v694 = vsel %vm691, %v687, %v661
    %v695 = vsel %vm691, %v690, %v662
    %v696 = vadd.f32 %v96, -5.0
    %v697 = vadd.f32 %v97, -5.0
    %v698 = vadd.f32 %v98, -5.0
    %v699 = vadd.f32 %v99, -5.0
    %v700 = vmax.f32 %v696, 0.0
    %v701 = vmax.f32 %v697, 0.0
    %v702 = vmax.f32 %v698, 0.0
    %v703 = vmax.f32 %v699, 0.0
    %v704 = vmin.f32 %v700, 1.0
    %v705 = vmin.f32 %v701, 1.0
    %v706 = vmin.f32 %v702, 1.0
    %v707 = vmin.f32 %v703, 1.0
    %v708 = vadd.f32 %v704, %v705
    %709 = vadd.xlane.f32.xlu0 %v708
    %v710 = vpop.xlane.xlu0 %709
    %v711 = vadd.f32 %v706, %v707
    %712 = vadd.xlane.f32.xlu0 %v711
    %v713 = vpop.xlane.xlu0 %712
    %v714 = vmul.f32 %v704, %v52
    %v715 = vmul.f32 %v705, %v53
    %v716 = vmul.f32 %v706, %v54
    %v717 = vmul.f32 %v707, %v55
    %v718 = vadd.f32 %v714, %v715
    %719 = vadd.xlane.f32.xlu0 %v718
    %v720 = vpop.xlane.xlu0 %719
    %v721 = vadd.f32 %v716, %v717
    %722 = vadd.xlane.f32.xlu0 %v721
    %v723 = vpop.xlane.xlu0 %722
    %vm724 = vcmp.eq.s32.totalorder %v101, 18
    %v725 = vsel %vm724, %v710, %v692
    %v726 = vsel %vm724, %v713, %v693
    %v727 = vsel %vm724, %v720, %v694
    %v728 = vsel %vm724, %v723, %v695
    %v729 = vadd.f32 %v96, -4.0
    %v730 = vadd.f32 %v97, -4.0
    %v731 = vadd.f32 %v98, -4.0
    %v732 = vadd.f32 %v99, -4.0
    %v733 = vmax.f32 %v729, 0.0
    %v734 = vmax.f32 %v730, 0.0
    %v735 = vmax.f32 %v731, 0.0
    %v736 = vmax.f32 %v732, 0.0
    %v737 = vmin.f32 %v733, 1.0
    %v738 = vmin.f32 %v734, 1.0
    %v739 = vmin.f32 %v735, 1.0
    %v740 = vmin.f32 %v736, 1.0
    %v741 = vadd.f32 %v737, %v738
    %742 = vadd.xlane.f32.xlu0 %v741
    %v743 = vpop.xlane.xlu0 %742
    %v744 = vadd.f32 %v739, %v740
    %745 = vadd.xlane.f32.xlu0 %v744
    %v746 = vpop.xlane.xlu0 %745
    %v747 = vmul.f32 %v737, %v52
    %v748 = vmul.f32 %v738, %v53
    %v749 = vmul.f32 %v739, %v54
    %v750 = vmul.f32 %v740, %v55
    %v751 = vadd.f32 %v747, %v748
    %752 = vadd.xlane.f32.xlu0 %v751
    %v753 = vpop.xlane.xlu0 %752
    %v754 = vadd.f32 %v749, %v750
    %755 = vadd.xlane.f32.xlu0 %v754
    %v756 = vpop.xlane.xlu0 %755
    %vm757 = vcmp.eq.s32.totalorder %v101, 19
    %v758 = vsel %vm757, %v743, %v725
    %v759 = vsel %vm757, %v746, %v726
    %v760 = vsel %vm757, %v753, %v727
    %v761 = vsel %vm757, %v756, %v728
    %v762 = vadd.f32 %v96, -3.0
    %v763 = vadd.f32 %v97, -3.0
    %v764 = vadd.f32 %v98, -3.0
    %v765 = vadd.f32 %v99, -3.0
    %v766 = vmax.f32 %v762, 0.0
    %v767 = vmax.f32 %v763, 0.0
    %v768 = vmax.f32 %v764, 0.0
    %v769 = vmax.f32 %v765, 0.0
    %v770 = vmin.f32 %v766, 1.0
    %v771 = vmin.f32 %v767, 1.0
    %v772 = vmin.f32 %v768, 1.0
    %v773 = vmin.f32 %v769, 1.0
    %v774 = vadd.f32 %v770, %v771
    %775 = vadd.xlane.f32.xlu0 %v774
    %v776 = vpop.xlane.xlu0 %775
    %v777 = vadd.f32 %v772, %v773
    %778 = vadd.xlane.f32.xlu0 %v777
    %v779 = vpop.xlane.xlu0 %778
    %v780 = vmul.f32 %v770, %v52
    %v781 = vmul.f32 %v771, %v53
    %v782 = vmul.f32 %v772, %v54
    %v783 = vmul.f32 %v773, %v55
    %v784 = vadd.f32 %v780, %v781
    %785 = vadd.xlane.f32.xlu0 %v784
    %v786 = vpop.xlane.xlu0 %785
    %v787 = vadd.f32 %v782, %v783
    %788 = vadd.xlane.f32.xlu0 %v787
    %v789 = vpop.xlane.xlu0 %788
    %vm790 = vcmp.eq.s32.totalorder %v101, 20
    %v791 = vsel %vm790, %v776, %v758
    %v792 = vsel %vm790, %v779, %v759
    %v793 = vsel %vm790, %v786, %v760
    %v794 = vsel %vm790, %v789, %v761
    %v795 = vadd.f32 %v96, -2.0
    %v796 = vadd.f32 %v97, -2.0
    %v797 = vadd.f32 %v98, -2.0
    %v798 = vadd.f32 %v99, -2.0
    %v799 = vmax.f32 %v795, 0.0
    %v800 = vmax.f32 %v796, 0.0
    %v801 = vmax.f32 %v797, 0.0
    %v802 = vmax.f32 %v798, 0.0
    %v803 = vmin.f32 %v799, 1.0
    %v804 = vmin.f32 %v800, 1.0
    %v805 = vmin.f32 %v801, 1.0
    %v806 = vmin.f32 %v802, 1.0
    %v807 = vadd.f32 %v803, %v804
    %808 = vadd.xlane.f32.xlu0 %v807
    %v809 = vpop.xlane.xlu0 %808
    %v810 = vadd.f32 %v805, %v806
    %811 = vadd.xlane.f32.xlu0 %v810
    %v812 = vpop.xlane.xlu0 %811
    %v813 = vmul.f32 %v803, %v52
    %v814 = vmul.f32 %v804, %v53
    %v815 = vmul.f32 %v805, %v54
    %v816 = vmul.f32 %v806, %v55
    %v817 = vadd.f32 %v813, %v814
    %818 = vadd.xlane.f32.xlu0 %v817
    %v819 = vpop.xlane.xlu0 %818
    %v820 = vadd.f32 %v815, %v816
    %821 = vadd.xlane.f32.xlu0 %v820
    %v822 = vpop.xlane.xlu0 %821
    %vm823 = vcmp.eq.s32.totalorder %v101, 21
    %v824 = vsel %vm823, %v809, %v791
    %v825 = vsel %vm823, %v812, %v792
    %v826 = vsel %vm823, %v819, %v793
    %v827 = vsel %vm823, %v822, %v794
    %v828 = vadd.f32 %v96, -1.0
    %v829 = vadd.f32 %v97, -1.0
    %v830 = vadd.f32 %v98, -1.0
    %v831 = vadd.f32 %v99, -1.0
    %v832 = vmax.f32 %v828, 0.0
    %v833 = vmax.f32 %v829, 0.0
    %v834 = vmax.f32 %v830, 0.0
    %v835 = vmax.f32 %v831, 0.0
    %v836 = vmin.f32 %v832, 1.0
    %v837 = vmin.f32 %v833, 1.0
    %v838 = vmin.f32 %v834, 1.0
    %v839 = vmin.f32 %v835, 1.0
    %v840 = vadd.f32 %v836, %v837
    %841 = vadd.xlane.f32.xlu0 %v840
    %v842 = vpop.xlane.xlu0 %841
    %v843 = vadd.f32 %v838, %v839
    %844 = vadd.xlane.f32.xlu0 %v843
    %v845 = vpop.xlane.xlu0 %844
    %v846 = vmul.f32 %v836, %v52
    %v847 = vmul.f32 %v837, %v53
    %v848 = vmul.f32 %v838, %v54
    %v849 = vmul.f32 %v839, %v55
    %v850 = vadd.f32 %v846, %v847
    %851 = vadd.xlane.f32.xlu0 %v850
    %v852 = vpop.xlane.xlu0 %851
    %v853 = vadd.f32 %v848, %v849
    %854 = vadd.xlane.f32.xlu0 %v853
    %v855 = vpop.xlane.xlu0 %854
    %vm856 = vcmp.eq.s32.totalorder %v101, 22
    %v857 = vsel %vm856, %v842, %v824
    %v858 = vsel %vm856, %v845, %v825
    %v859 = vsel %vm856, %v852, %v826
    %v860 = vsel %vm856, %v855, %v827
    %v861 = vadd.f32 %v96, 0.0
    %v862 = vadd.f32 %v97, 0.0
    %v863 = vadd.f32 %v98, 0.0
    %v864 = vadd.f32 %v99, 0.0
    %v865 = vmax.f32 %v861, 0.0
    %v866 = vmax.f32 %v862, 0.0
    %v867 = vmax.f32 %v863, 0.0
    %v868 = vmax.f32 %v864, 0.0
    %v869 = vmin.f32 %v865, 1.0
    %v870 = vmin.f32 %v866, 1.0
    %v871 = vmin.f32 %v867, 1.0
    %v872 = vmin.f32 %v868, 1.0
    %v873 = vadd.f32 %v869, %v870
    %874 = vadd.xlane.f32.xlu0 %v873
    %v875 = vpop.xlane.xlu0 %874
    %v876 = vadd.f32 %v871, %v872
    %877 = vadd.xlane.f32.xlu0 %v876
    %v878 = vpop.xlane.xlu0 %877
    %v879 = vmul.f32 %v869, %v52
    %v880 = vmul.f32 %v870, %v53
    %v881 = vmul.f32 %v871, %v54
    %v882 = vmul.f32 %v872, %v55
    %v883 = vadd.f32 %v879, %v880
    %884 = vadd.xlane.f32.xlu0 %v883
    %v885 = vpop.xlane.xlu0 %884
    %v886 = vadd.f32 %v881, %v882
    %887 = vadd.xlane.f32.xlu0 %v886
    %v888 = vpop.xlane.xlu0 %887
    %vm889 = vcmp.eq.s32.totalorder %v101, 23
    %v890 = vsel %vm889, %v875, %v857
    %v891 = vsel %vm889, %v878, %v858
    %v892 = vsel %vm889, %v885, %v859
    %v893 = vsel %vm889, %v888, %v860
    %s894 = smul.u32 0, 256
    %s895 = ssub.s32 200, %s894
    %p896 = scmp.lt.s32.totalorder %s895, 256
    %s897 = scalar_select %p896, %s895, 256
    %p898 = scmp.gt.s32.totalorder %s897, 0
    %s899 = scalar_select %p898, %s897, 0
    %s900 = scvt.s32.f32 %s899
    %vm901 = vcmp.eq.s32.totalorder %v101, 24
    %v902 = vstv %s900
    %v903 = vsel %vm901, %v902, %v890
    %v904 = vsel %vm901, %v902, %v891
    %v905 = vadd.f32 %v52, %v53
    %906 = vadd.xlane.f32.xlu0 %v905
    %v907 = vpop.xlane.xlu0 %906
    %v908 = vadd.f32 %v54, %v55
    %909 = vadd.xlane.f32.xlu0 %v908
    %v910 = vpop.xlane.xlu0 %909
    %v911 = vsel %vm901, %v907, %v892
    %v912 = vsel %vm901, %v910, %v893
    %v913 = vld [vmem:[#allocation3] sm:$0xff]
    %v914 = vld [vmem:[#allocation3 + $0x8] sm:$0xff]
    %v915 = vadd.f32 %v913, %v903
    %v916 = vadd.f32 %v914, %v904
    %917 = vst [vmem:[#allocation3] sm:$0xff] %v915
    %918 = vst [vmem:[#allocation3 + $0x8] sm:$0xff] %v916
    %v919 = vld [vmem:[#allocation2] sm:$0xff]
    %v920 = vld [vmem:[#allocation2 + $0x8] sm:$0xff]
    %v921 = vadd.f32 %v919, %v911
    %v922 = vadd.f32 %v920, %v912
    %923 = vst [vmem:[#allocation2] sm:$0xff] %v921
    %924 = vst [vmem:[#allocation2 + $0x8] sm:$0xff] %v922
    // Predicated region
    $region22: #{tpu_custom_call.1} parent=1 // pred_check
      %p925 = pneg %p40
    $region23: #{tpu_custom_call.1} parent=1 // pred_check_branch
      %927 = sbr.rel (%p925) target = $region25
    $region24: #{tpu_custom_call.1} parent=1 // pred_region
      %v928 = vld [vmem:[#allocation2] sm:$0xff]
      %v929 = vld [vmem:[#allocation2 + $0x8] sm:$0xff]
      %v930 = vld [vmem:[#allocation3] sm:$0xff]
      %v931 = vld [vmem:[#allocation3 + $0x8] sm:$0xff]
      %v932 = vadd.f32 %v930, 1e-16
      %v933 = vadd.f32 %v931, 1e-16
      %v934 = vrcp.pop %v932
      %v935 = vmul.f32 %v928, %v934
      %v936 = vrcp.pop %v933
      %v937 = vmul.f32 %v929, %v936
      %940 = vrot.lane.b32.xlu0 %v928, 1
      %v941 = vpop.permute.xlu0 %940
      %942 = vrot.lane.b32.xlu0 %v929, 1
      %v943 = vpop.permute.xlu0 %942
      %vm946 = vcmask 7168
      %v947 = vsel %vm946, 0.0, %v941
      %v948 = vsel %vm946, 0.0, %v943
      %v949 = vsub.f32 %v928, %v947
      %v950 = vsub.f32 %v929, %v948
      %v951 = vsel %vm901, %v928, 0.0
      %v952 = vsel %vm901, %v929, 0.0
      %953 = vadd.xlane.f32.xlu0 %v951
      %v954 = vpop.xlane.xlu0 %953
      %955 = vadd.xlane.f32.xlu0 %v952
      %v956 = vpop.xlane.xlu0 %955
      %v957 = vmul.f32 %v949, %v935
      %v958 = vmul.f32 %v950, %v937
      %959 = vadd.xlane.f32.xlu0 %v957
      %v960 = vpop.xlane.xlu0 %959
      %961 = vadd.xlane.f32.xlu0 %v958
      %v962 = vpop.xlane.xlu0 %961
      %v963 = vrcp.pop %v954
      %v964 = vmul.f32 %v960, %v963
      %v965 = vrcp.pop %v956
      %v966 = vmul.f32 %v962, %v965
      %967 = vst [vmem:[#allocation9] sm:$0xff] %v964
      %968 = vst [vmem:[#allocation9 + $0x8] sm:$0xff] %v966
    $region25: #{tpu_custom_call.1} parent=1 // pred_fallthru
      _
    // Predicated region
    $region26: #{tpu_custom_call.1} parent=1 // pred_check
      _
    $region27: #{tpu_custom_call.1} parent=1 // pred_check_branch
      %970 = sbr.rel (0) target = $region29
    $region28: #{tpu_custom_call.1} parent=1 // pred_region
      %s972 = ssub.s32 256, 256
      %973 = vsyncadd [#allocation6], %s972
      %s974 = sshll.u32 [#allocation9], 4
      %s975 = int_to_ptr.vmem [resolvable:$true] %s974
      %980 = dma.vmem_to_hbm [thread:$0]  %s975, 256, %s2, [#allocation6], 128, 128, 8
    $region29: #{tpu_custom_call.1} parent=1 // pred_fallthru
      _
    // Predicated region
    $region30: #{tpu_custom_call.1} parent=1 // pred_check
      _
    $region31: #{tpu_custom_call.1} parent=1 // pred_check_branch
      %982 = sbr.rel (0) target = $region33
    $region32: #{tpu_custom_call.1} parent=1 // pred_region
      %983 = dma.done [#allocation6], 256
    $region33: #{tpu_custom_call.1} parent=1 // pred_fallthru
      _
    %984 = vsyncpa [#allocation5], 1
    %985 = vsyncpa [#allocation8], 1
    %986 = vsyncpa [#allocation6], 1

</llo_original>
